<compile_context>
chip_gen: v7x
topology: tpu7x:2x2x1
jax: 0.10.0
libtpu: 0.0.40
codegen_flags: <defaults>
</compile_context>

<pallas_src>
import functools
import math

import jax
import jax.numpy as jnp
from jax.experimental import pallas as pl
from jax.experimental.pallas import tpu as pltpu


# ----------------------------------------------------------------------------
# In-kernel helpers
# ----------------------------------------------------------------------------
def _erf(x):
    # TODO(synk): exact erf replaced by Abramowitz&Stegun 7.1.26 (|err|<=1.5e-7)
    # built from exp/mul/div only, since lax.erf has no guaranteed Mosaic lowering.
    a1, a2, a3, a4, a5 = 0.254829592, -0.284496736, 1.421413741, -1.453152027, 1.061405429
    t = 1.0 / (1.0 + 0.3275911 * jnp.abs(x))
    poly = ((((a5 * t + a4) * t + a3) * t + a2) * t + a1) * t
    y = 1.0 - poly * jnp.exp(-(x * x))
    return jnp.where(x >= 0.0, y, -y)


def _gelu_exact(x):
    return 0.5 * x * (1.0 + _erf(x * 0.7071067811865476))


# ----------------------------------------------------------------------------
# The fused kernel (one grid step == one batch element)
# ----------------------------------------------------------------------------
def _fused_kernel(x_ref, m_csc_ref, w_proj_ref, b_proj_ref,
                  bn_scale_ref, bn_shift_ref, a_ggm_ref, b_ggm_ref,
                  w_qkv_ref, b_qkv_ref, w_out_ref, b_out_ref, o_ref):
    HW = x_ref.shape[0]
    L = a_ggm_ref.shape[1]
    n_unf = HW // L                                   # == window_size ** 2

    # ---- CrossScaleCom: multi-scale depthwise conv as a dense spatial operator.
    # m_csc[q, r, c] folds the per-head kernel sizes + zero padding; the output
    # rows r are pre-permuted into unfold-token order.  Each step is one row
    # load + one (HW, Cin) FMA — no relayouts, no jnp.pad, no edge masks.
    acc = x_ref[0] * m_csc_ref[0]
    for q in range(1, HW):
        acc = acc + x_ref[q] * m_csc_ref[q]                       # (HW, Cin)
    # channel shuffle + depthwise bias are pre-folded into w_proj / b_proj (MXU).
    y = jnp.dot(acc, w_proj_ref[...],
                preferred_element_type=jnp.float32) + b_proj_ref[...]   # (HW, Cout)

    # ---- Guide branch: BatchNorm(eval) + exact GELU fused in-kernel, then the
    # stride-ws depthwise "ggm" conv evaluated only at the L strided positions.
    # TODO(synk): BatchNorm2d uses eval-mode running statistics.
    act = _gelu_exact(y * bn_scale_ref[...] + bn_shift_ref[...])  # (HW, Cout), vregs
    g = act[0] * a_ggm_ref[0]
    for q in range(1, HW):
        g = g + act[q] * a_ggm_ref[q]                             # (L, Cout)
    g = g + b_ggm_ref[...]

    # ---- tokens = [guide] ++ F.unfold(y, ws, stride=ws): y rows are already in
    # unfold-token order, so each token slab is one contiguous static slice.
    slabs = [g] + [y[t * L:(t + 1) * L, :] for t in range(n_unf)]

    # ---- qkv 1x1 conv: downstream only consumes attention channel 0, so only
    # qkv output channels (0, C, 2C) are computed.  1/sqrt(C) is pre-folded into
    # the q weights/bias.
    wq, wk, wv = w_qkv_ref[0], w_qkv_ref[1], w_qkv_ref[2]
    q0 = jnp.stack([jnp.sum(s * wq, axis=-1) for s in slabs], axis=0) + b_qkv_ref[:, 0:1]
    k0 = jnp.stack([jnp.sum(s * wk, axis=-1) for s in slabs], axis=0) + b_qkv_ref[:, 1:2]
    v0 = jnp.stack([jnp.sum(s * wv, axis=-1) for s in slabs], axis=0) + b_qkv_ref[:, 2:3]
    # q0 / k0 / v0: (T, L) with T = n_unf + 1 == Cout

    # ---- single-channel attention over the T tokens (two tiny MXU dots).
    s = jax.lax.dot_general(q0, k0, (((1,), (1,)), ((), ())),
                            preferred_element_type=jnp.float32)          # (T, T)
    s = s - jnp.max(s, axis=-1, keepdims=True)
    p = jnp.exp(s)
    p = p * pl.reciprocal(jnp.sum(p, axis=-1, keepdims=True), approx=False)
    out0 = jax.lax.dot_general(p, v0, (((1,), (0,)), ((), ())),
                               preferred_element_type=jnp.float32)       # (T, L) == (C, L)

    # ---- final 1x1 projection; channel-major output so the wrapper only reshapes.
    o_ref[...] = (jnp.dot(w_out_ref[...], out0, preferred_element_type=jnp.float32)
                  + b_out_ref[...])                                      # (Cout, L)


# ----------------------------------------------------------------------------
# Wrapper: weight-only preprocessing + single pallas_call
# ----------------------------------------------------------------------------
def _const_spec(a):
    return pl.BlockSpec(a.shape, lambda b, _n=a.ndim: (0,) * _n)


@functools.partial(jax.jit, static_argnames=("num_heads", "window_size"))
def stepwise_patch_merging(x, params, *, num_heads=4, window_size=2):
    B, Cin, H, W = x.shape
    nh, ws = num_heads, window_size
    cph = Cin // nh
    Cout = params["csc_proj_w"].shape[0]
    HW = H * W
    nwh, nww = H // ws, W // ws
    L = nwh * nww

    # Reference PyTorch forward only type-checks for these degenerate shapes.
    assert cph == H == W and Cout == ws * ws + 1 and H % ws == 0

    # ---------------- weight-only preprocessing (no activation traffic) -------
    qy = jnp.arange(HW, dtype=jnp.int32) // W
    qx = jnp.arange(HW, dtype=jnp.int32) % W

    def conv_operator(wts, out_ys, out_xs):
        # wts: (Cg, K, K). Returns M[q, o, c] = tap weight of input q for output o.
        K = wts.shape[-1]
        pad = K // 2
        dy = qy[:, None] - out_ys[None, :] + pad
        dx = qx[:, None] - out_xs[None, :] + pad
        valid = (dy >= 0) & (dy < K) & (dx >= 0) & (dx < K)
        taps = wts[:, jnp.clip(dy, 0, K - 1), jnp.clip(dx, 0, K - 1)]   # (Cg, HW, O)
        taps = jnp.where(valid[None], taps, 0.0)
        return jnp.transpose(taps, (1, 2, 0))                           # (HW, O, Cg)

    # Unfold-token ordering of the CSC output rows:
    #   new row r = (ky*ws + kx) * L + (wy*nww + wx)  <- raster (wy*ws+ky, wx*ws+kx)
    perm = [(wy * ws + ky) * W + (wx * ws + kx)
            for ky in range(ws) for kx in range(ws)
            for wy in range(nwh) for wx in range(nww)]
    perm = jnp.array(perm, dtype=jnp.int32)

    # CrossScaleCom depthwise operator: per-head kernel size + padding baked in;
    # output rows permuted into unfold-token order.
    m_csc = jnp.concatenate([conv_operator(w, qy, qx) for w in params["csc_dw_w"]],
                            axis=-1)                                     # (HW, HW, Cin)
    m_csc = m_csc[:, perm, :]

    # Channel shuffle folded into the 1x1 projection; depthwise bias folded too.
    w_proj = (params["csc_proj_w"].reshape(Cout, cph, nh)
              .transpose(0, 2, 1).reshape(Cout, Cin).T)                  # (Cin, Cout)
    dw_b = jnp.concatenate(params["csc_dw_b"])                           # (Cin,)
    b_proj = (params["csc_proj_b"] + dw_b @ w_proj).reshape(1, Cout)

    # BatchNorm (eval-mode running stats) as per-channel scale/shift.
    bn_scale = params["bn_g"] / jnp.sqrt(params["bn_v"] + 1e-5)
    bn_shift = (params["bn_b"] - params["bn_m"] * bn_scale).reshape(1, Cout)
    bn_scale = bn_scale.reshape(1, Cout)

    # ggm depthwise operator: stride-ws output positions only, padding baked in;
    # its input (q) axis permuted to match the unfold-ordered activation rows.
    oy = (jnp.arange(L, dtype=jnp.int32) // nww) * ws
    ox = (jnp.arange(L, dtype=jnp.int32) % nww) * ws
    a_ggm = conv_operator(params["ggm_w"], oy, ox)[perm]                 # (HW, L, Cout)
    b_ggm = params["ggm_b"].reshape(1, Cout)

    # Only qkv output channels (0, Cout, 2*Cout) feed the used attention slice;
    # fold the 1/sqrt(C) attention scale into the q row.
    sel = jnp.array([0, Cout, 2 * Cout], dtype=jnp.int32)
    qk_scale = jnp.array([1.0 / math.sqrt(Cout), 1.0, 1.0], jnp.float32)
    w_qkv = params["qkv_w"][sel] * qk_scale[:, None]                     # (3, Cout)
    b_qkv = (params["qkv_b"][sel] * qk_scale).reshape(1, 3)

    w_out = params["lfg_proj_w"]                                         # (Cout, Cout)
    b_out = params["lfg_proj_b"].reshape(Cout, 1)

    # Channel-last rows so channels ride the TPU lanes inside the kernel.
    x_cl = jnp.transpose(x, (0, 2, 3, 1)).reshape(B, HW, Cin)

    grid_spec = pltpu.PrefetchScalarGridSpec(
        num_scalar_prefetch=0,
        grid=(B,),
        in_specs=[
            pl.BlockSpec((None, HW, Cin), lambda b: (b, 0, 0)),
            _const_spec(m_csc), _const_spec(w_proj), _const_spec(b_proj),
            _const_spec(bn_scale), _const_spec(bn_shift),
            _const_spec(a_ggm), _const_spec(b_ggm),
            _const_spec(w_qkv), _const_spec(b_qkv),
            _const_spec(w_out), _const_spec(b_out),
        ],
        out_specs=pl.BlockSpec((None, Cout, L), lambda b: (b, 0, 0)),
    )

    out = pl.pallas_call(
        _fused_kernel,
        out_shape=jax.ShapeDtypeStruct((B, Cout, L), jnp.float32),
        grid_spec=grid_spec,
        compiler_params=pltpu.CompilerParams(
            dimension_semantics=("parallel",),          # use both TCs on v7x
            vmem_limit_bytes=32 * 1024 * 1024),
    )(x_cl, m_csc, w_proj, b_proj, bn_scale, bn_shift,
      a_ggm, b_ggm, w_qkv, b_qkv, w_out, b_out)

    # (B, Cout, L) -> NCHW is a pure reshape (l is row-major over the 2x2 grid).
    return out.reshape(B, Cout, nwh, nww)


# ----------------------------------------------------------------------------
# Parameter initialization (deterministic, synthetic)
# ----------------------------------------------------------------------------
def init_params(key, Cin, Cout, num_heads, kernel_sizes, lfg_kernel):
    cph = Cin // num_heads
    p = {"csc_dw_w": [], "csc_dw_b": []}
    for k in kernel_sizes:
        key, k1, k2 = jax.random.split(key, 3)
        p["csc_dw_w"].append(jax.random.normal(k1, (cph, k, k), jnp.float32) * 0.1)
        p["csc_dw_b"].append(jax.random.normal(k2, (cph,), jnp.float32) * 0.1)

    key, k1, k2 = jax.random.split(key, 3)
    p["csc_proj_w"] = jax.random.normal(k1, (Cout, Cin), jnp.float32) * 0.1
    p["csc_proj_b"] = jax.random.normal(k2, (Cout,), jnp.float32) * 0.1

    key, k1, k2, k3, k4 = jax.random.split(key, 5)
    p["bn_g"] = 1.0 + 0.1 * jax.random.normal(k1, (Cout,), jnp.float32)
    p["bn_b"] = 0.1 * jax.random.normal(k2, (Cout,), jnp.float32)
    p["bn_m"] = 0.1 * jax.random.normal(k3, (Cout,), jnp.float32)
    p["bn_v"] = 1.0 + 0.1 * jnp.abs(jax.random.normal(k4, (Cout,), jnp.float32))

    key, k1, k2 = jax.random.split(key, 3)
    p["ggm_w"] = jax.random.normal(k1, (Cout, lfg_kernel, lfg_kernel), jnp.float32) * 0.1
    p["ggm_b"] = jax.random.normal(k2, (Cout,), jnp.float32) * 0.1

    key, k1, k2 = jax.random.split(key, 3)
    p["qkv_w"] = jax.random.normal(k1, (3 * Cout, Cout), jnp.float32) * 0.1
    p["qkv_b"] = jax.random.normal(k2, (3 * Cout,), jnp.float32) * 0.1

    key, k1, k2 = jax.random.split(key, 3)
    p["lfg_proj_w"] = jax.random.normal(k1, (Cout, Cout), jnp.float32) * 0.1
    p["lfg_proj_b"] = jax.random.normal(k2, (Cout,), jnp.float32) * 0.1
    return p


# ----------------------------------------------------------------------------
if __name__ == "__main__":
    key = jax.random.PRNGKey(0)
    # Shapes chosen so the reference PyTorch forward is valid (see header note).
    B, Cin, H, W = 2, 16, 4, 4
    Cout, num_heads, window_size = 5, 4, 2
    kernel_sizes = [3, 5, 7, 9]

    key, kx = jax.random.split(key)
    x = jax.random.normal(kx, (B, Cin, H, W), jnp.float32)
    params = init_params(key, Cin, Cout, num_heads, kernel_sizes, lfg_kernel=7)

    y = stepwise_patch_merging(x, params, num_heads=num_heads,
                               window_size=window_size)
    y = jax.block_until_ready(y)
    assert y.shape == (B, Cout, H // window_size, W // window_size), y.shape
    assert y.dtype == jnp.float32
    print("KERNEL_OK")
</pallas_src>

<mosaic_0001>
module attributes {stable_mosaic.version = 11 : i64} {
  func.func @_fused_kernel(%arg0: i32, %arg1: memref<1x16x16xf32, #tpu.memory_space<vmem>>, %arg2: memref<16x16x16xf32, #tpu.memory_space<vmem>>, %arg3: memref<16x5xf32, #tpu.memory_space<vmem>>, %arg4: memref<1x5xf32, #tpu.memory_space<vmem>>, %arg5: memref<1x5xf32, #tpu.memory_space<vmem>>, %arg6: memref<1x5xf32, #tpu.memory_space<vmem>>, %arg7: memref<16x4x5xf32, #tpu.memory_space<vmem>>, %arg8: memref<1x5xf32, #tpu.memory_space<vmem>>, %arg9: memref<3x5xf32, #tpu.memory_space<vmem>>, %arg10: memref<1x3xf32, #tpu.memory_space<vmem>>, %arg11: memref<5x5xf32, #tpu.memory_space<vmem>>, %arg12: memref<5x1xf32, #tpu.memory_space<vmem>>, %arg13: memref<1x5x4xf32, #tpu.memory_space<vmem>>) attributes {dimension_semantics = [#tpu.dimension_semantics<parallel>], iteration_bounds = array<i64: 2>, scalar_prefetch = 0 : i64, scratch_operands = 0 : i64, tpu.core_type = #tpu.core_type<tc>, window_params = [{transform_indices = @transform_0, window_bounds = array<i64: 1, 16, 16>}, {pipeline_mode = #tpu.pipeline_mode<synchronous>, transform_indices = @transform_1, window_bounds = array<i64: 16, 16, 16>}, {pipeline_mode = #tpu.pipeline_mode<synchronous>, transform_indices = @transform_2, window_bounds = array<i64: 16, 5>}, {pipeline_mode = #tpu.pipeline_mode<synchronous>, transform_indices = @transform_3, window_bounds = array<i64: 1, 5>}, {pipeline_mode = #tpu.pipeline_mode<synchronous>, transform_indices = @transform_4, window_bounds = array<i64: 1, 5>}, {pipeline_mode = #tpu.pipeline_mode<synchronous>, transform_indices = @transform_5, window_bounds = array<i64: 1, 5>}, {pipeline_mode = #tpu.pipeline_mode<synchronous>, transform_indices = @transform_6, window_bounds = array<i64: 16, 4, 5>}, {pipeline_mode = #tpu.pipeline_mode<synchronous>, transform_indices = @transform_7, window_bounds = array<i64: 1, 5>}, {pipeline_mode = #tpu.pipeline_mode<synchronous>, transform_indices = @transform_8, window_bounds = array<i64: 3, 5>}, {pipeline_mode = #tpu.pipeline_mode<synchronous>, transform_indices = @transform_9, window_bounds = array<i64: 1, 3>}, {pipeline_mode = #tpu.pipeline_mode<synchronous>, transform_indices = @transform_10, window_bounds = array<i64: 5, 5>}, {pipeline_mode = #tpu.pipeline_mode<synchronous>, transform_indices = @transform_11, window_bounds = array<i64: 5, 1>}, {transform_indices = @transform_12, window_bounds = array<i64: 1, 5, 4>}]} {
    %c0 = arith.constant 0 : index
    %c0_0 = arith.constant 0 : index
    %c0_1 = arith.constant 0 : index
    %0 = vector.load %arg1[%c0, %c0_0, %c0_1] : memref<1x16x16xf32, #tpu.memory_space<vmem>>, vector<1x1x16xf32>
    %1 = vector.shape_cast %0 : vector<1x1x16xf32> to vector<16xf32>
    %c0_2 = arith.constant 0 : index
    %c0_3 = arith.constant 0 : index
    %c0_4 = arith.constant 0 : index
    %2 = vector.load %arg2[%c0_2, %c0_3, %c0_4] : memref<16x16x16xf32, #tpu.memory_space<vmem>>, vector<1x16x16xf32>
    %3 = vector.shape_cast %2 : vector<1x16x16xf32> to vector<16x16xf32>
    %4 = vector.shape_cast %1 : vector<16xf32> to vector<1x16xf32>
    %5 = vector.broadcast %4 : vector<1x16xf32> to vector<16x16xf32>
    %6 = arith.mulf %5, %3 : vector<16x16xf32>
    %c0_5 = arith.constant 0 : index
    %c1 = arith.constant 1 : index
    %c0_6 = arith.constant 0 : index
    %7 = vector.load %arg1[%c0_5, %c1, %c0_6] : memref<1x16x16xf32, #tpu.memory_space<vmem>>, vector<1x1x16xf32>
    %8 = vector.shape_cast %7 : vector<1x1x16xf32> to vector<16xf32>
    %c1_7 = arith.constant 1 : index
    %c0_8 = arith.constant 0 : index
    %c0_9 = arith.constant 0 : index
    %9 = vector.load %arg2[%c1_7, %c0_8, %c0_9] : memref<16x16x16xf32, #tpu.memory_space<vmem>>, vector<1x16x16xf32>
    %10 = vector.shape_cast %9 : vector<1x16x16xf32> to vector<16x16xf32>
    %11 = vector.shape_cast %8 : vector<16xf32> to vector<1x16xf32>
    %12 = vector.broadcast %11 : vector<1x16xf32> to vector<16x16xf32>
    %13 = arith.mulf %12, %10 : vector<16x16xf32>
    %14 = arith.addf %6, %13 : vector<16x16xf32>
    %c0_10 = arith.constant 0 : index
    %c2 = arith.constant 2 : index
    %c0_11 = arith.constant 0 : index
    %15 = vector.load %arg1[%c0_10, %c2, %c0_11] : memref<1x16x16xf32, #tpu.memory_space<vmem>>, vector<1x1x16xf32>
    %16 = vector.shape_cast %15 : vector<1x1x16xf32> to vector<16xf32>
    %c2_12 = arith.constant 2 : index
    %c0_13 = arith.constant 0 : index
    %c0_14 = arith.constant 0 : index
    %17 = vector.load %arg2[%c2_12, %c0_13, %c0_14] : memref<16x16x16xf32, #tpu.memory_space<vmem>>, vector<1x16x16xf32>
    %18 = vector.shape_cast %17 : vector<1x16x16xf32> to vector<16x16xf32>
    %19 = vector.shape_cast %16 : vector<16xf32> to vector<1x16xf32>
    %20 = vector.broadcast %19 : vector<1x16xf32> to vector<16x16xf32>
    %21 = arith.mulf %20, %18 : vector<16x16xf32>
    %22 = arith.addf %14, %21 : vector<16x16xf32>
    %c0_15 = arith.constant 0 : index
    %c3 = arith.constant 3 : index
    %c0_16 = arith.constant 0 : index
    %23 = vector.load %arg1[%c0_15, %c3, %c0_16] : memref<1x16x16xf32, #tpu.memory_space<vmem>>, vector<1x1x16xf32>
    %24 = vector.shape_cast %23 : vector<1x1x16xf32> to vector<16xf32>
    %c3_17 = arith.constant 3 : index
    %c0_18 = arith.constant 0 : index
    %c0_19 = arith.constant 0 : index
    %25 = vector.load %arg2[%c3_17, %c0_18, %c0_19] : memref<16x16x16xf32, #tpu.memory_space<vmem>>, vector<1x16x16xf32>
    %26 = vector.shape_cast %25 : vector<1x16x16xf32> to vector<16x16xf32>
    %27 = vector.shape_cast %24 : vector<16xf32> to vector<1x16xf32>
    %28 = vector.broadcast %27 : vector<1x16xf32> to vector<16x16xf32>
    %29 = arith.mulf %28, %26 : vector<16x16xf32>
    %30 = arith.addf %22, %29 : vector<16x16xf32>
    %c0_20 = arith.constant 0 : index
    %c4 = arith.constant 4 : index
    %c0_21 = arith.constant 0 : index
    %31 = vector.load %arg1[%c0_20, %c4, %c0_21] : memref<1x16x16xf32, #tpu.memory_space<vmem>>, vector<1x1x16xf32>
    %32 = vector.shape_cast %31 : vector<1x1x16xf32> to vector<16xf32>
    %c4_22 = arith.constant 4 : index
    %c0_23 = arith.constant 0 : index
    %c0_24 = arith.constant 0 : index
    %33 = vector.load %arg2[%c4_22, %c0_23, %c0_24] : memref<16x16x16xf32, #tpu.memory_space<vmem>>, vector<1x16x16xf32>
    %34 = vector.shape_cast %33 : vector<1x16x16xf32> to vector<16x16xf32>
    %35 = vector.shape_cast %32 : vector<16xf32> to vector<1x16xf32>
    %36 = vector.broadcast %35 : vector<1x16xf32> to vector<16x16xf32>
    %37 = arith.mulf %36, %34 : vector<16x16xf32>
    %38 = arith.addf %30, %37 : vector<16x16xf32>
    %c0_25 = arith.constant 0 : index
    %c5 = arith.constant 5 : index
    %c0_26 = arith.constant 0 : index
    %39 = vector.load %arg1[%c0_25, %c5, %c0_26] : memref<1x16x16xf32, #tpu.memory_space<vmem>>, vector<1x1x16xf32>
    %40 = vector.shape_cast %39 : vector<1x1x16xf32> to vector<16xf32>
    %c5_27 = arith.constant 5 : index
    %c0_28 = arith.constant 0 : index
    %c0_29 = arith.constant 0 : index
    %41 = vector.load %arg2[%c5_27, %c0_28, %c0_29] : memref<16x16x16xf32, #tpu.memory_space<vmem>>, vector<1x16x16xf32>
    %42 = vector.shape_cast %41 : vector<1x16x16xf32> to vector<16x16xf32>
    %43 = vector.shape_cast %40 : vector<16xf32> to vector<1x16xf32>
    %44 = vector.broadcast %43 : vector<1x16xf32> to vector<16x16xf32>
    %45 = arith.mulf %44, %42 : vector<16x16xf32>
    %46 = arith.addf %38, %45 : vector<16x16xf32>
    %c0_30 = arith.constant 0 : index
    %c6 = arith.constant 6 : index
    %c0_31 = arith.constant 0 : index
    %47 = vector.load %arg1[%c0_30, %c6, %c0_31] : memref<1x16x16xf32, #tpu.memory_space<vmem>>, vector<1x1x16xf32>
    %48 = vector.shape_cast %47 : vector<1x1x16xf32> to vector<16xf32>
    %c6_32 = arith.constant 6 : index
    %c0_33 = arith.constant 0 : index
    %c0_34 = arith.constant 0 : index
    %49 = vector.load %arg2[%c6_32, %c0_33, %c0_34] : memref<16x16x16xf32, #tpu.memory_space<vmem>>, vector<1x16x16xf32>
    %50 = vector.shape_cast %49 : vector<1x16x16xf32> to vector<16x16xf32>
    %51 = vector.shape_cast %48 : vector<16xf32> to vector<1x16xf32>
    %52 = vector.broadcast %51 : vector<1x16xf32> to vector<16x16xf32>
    %53 = arith.mulf %52, %50 : vector<16x16xf32>
    %54 = arith.addf %46, %53 : vector<16x16xf32>
    %c0_35 = arith.constant 0 : index
    %c7 = arith.constant 7 : index
    %c0_36 = arith.constant 0 : index
    %55 = vector.load %arg1[%c0_35, %c7, %c0_36] : memref<1x16x16xf32, #tpu.memory_space<vmem>>, vector<1x1x16xf32>
    %56 = vector.shape_cast %55 : vector<1x1x16xf32> to vector<16xf32>
    %c7_37 = arith.constant 7 : index
    %c0_38 = arith.constant 0 : index
    %c0_39 = arith.constant 0 : index
    %57 = vector.load %arg2[%c7_37, %c0_38, %c0_39] : memref<16x16x16xf32, #tpu.memory_space<vmem>>, vector<1x16x16xf32>
    %58 = vector.shape_cast %57 : vector<1x16x16xf32> to vector<16x16xf32>
    %59 = vector.shape_cast %56 : vector<16xf32> to vector<1x16xf32>
    %60 = vector.broadcast %59 : vector<1x16xf32> to vector<16x16xf32>
    %61 = arith.mulf %60, %58 : vector<16x16xf32>
    %62 = arith.addf %54, %61 : vector<16x16xf32>
    %c0_40 = arith.constant 0 : index
    %c8 = arith.constant 8 : index
    %c0_41 = arith.constant 0 : index
    %63 = vector.load %arg1[%c0_40, %c8, %c0_41] : memref<1x16x16xf32, #tpu.memory_space<vmem>>, vector<1x1x16xf32>
    %64 = vector.shape_cast %63 : vector<1x1x16xf32> to vector<16xf32>
    %c8_42 = arith.constant 8 : index
    %c0_43 = arith.constant 0 : index
    %c0_44 = arith.constant 0 : index
    %65 = vector.load %arg2[%c8_42, %c0_43, %c0_44] : memref<16x16x16xf32, #tpu.memory_space<vmem>>, vector<1x16x16xf32>
    %66 = vector.shape_cast %65 : vector<1x16x16xf32> to vector<16x16xf32>
    %67 = vector.shape_cast %64 : vector<16xf32> to vector<1x16xf32>
    %68 = vector.broadcast %67 : vector<1x16xf32> to vector<16x16xf32>
    %69 = arith.mulf %68, %66 : vector<16x16xf32>
    %70 = arith.addf %62, %69 : vector<16x16xf32>
    %c0_45 = arith.constant 0 : index
    %c9 = arith.constant 9 : index
    %c0_46 = arith.constant 0 : index
    %71 = vector.load %arg1[%c0_45, %c9, %c0_46] : memref<1x16x16xf32, #tpu.memory_space<vmem>>, vector<1x1x16xf32>
    %72 = vector.shape_cast %71 : vector<1x1x16xf32> to vector<16xf32>
    %c9_47 = arith.constant 9 : index
    %c0_48 = arith.constant 0 : index
    %c0_49 = arith.constant 0 : index
    %73 = vector.load %arg2[%c9_47, %c0_48, %c0_49] : memref<16x16x16xf32, #tpu.memory_space<vmem>>, vector<1x16x16xf32>
    %74 = vector.shape_cast %73 : vector<1x16x16xf32> to vector<16x16xf32>
    %75 = vector.shape_cast %72 : vector<16xf32> to vector<1x16xf32>
    %76 = vector.broadcast %75 : vector<1x16xf32> to vector<16x16xf32>
    %77 = arith.mulf %76, %74 : vector<16x16xf32>
    %78 = arith.addf %70, %77 : vector<16x16xf32>
    %c0_50 = arith.constant 0 : index
    %c10 = arith.constant 10 : index
    %c0_51 = arith.constant 0 : index
    %79 = vector.load %arg1[%c0_50, %c10, %c0_51] : memref<1x16x16xf32, #tpu.memory_space<vmem>>, vector<1x1x16xf32>
    %80 = vector.shape_cast %79 : vector<1x1x16xf32> to vector<16xf32>
    %c10_52 = arith.constant 10 : index
    %c0_53 = arith.constant 0 : index
    %c0_54 = arith.constant 0 : index
    %81 = vector.load %arg2[%c10_52, %c0_53, %c0_54] : memref<16x16x16xf32, #tpu.memory_space<vmem>>, vector<1x16x16xf32>
    %82 = vector.shape_cast %81 : vector<1x16x16xf32> to vector<16x16xf32>
    %83 = vector.shape_cast %80 : vector<16xf32> to vector<1x16xf32>
    %84 = vector.broadcast %83 : vector<1x16xf32> to vector<16x16xf32>
    %85 = arith.mulf %84, %82 : vector<16x16xf32>
    %86 = arith.addf %78, %85 : vector<16x16xf32>
    %c0_55 = arith.constant 0 : index
    %c11 = arith.constant 11 : index
    %c0_56 = arith.constant 0 : index
    %87 = vector.load %arg1[%c0_55, %c11, %c0_56] : memref<1x16x16xf32, #tpu.memory_space<vmem>>, vector<1x1x16xf32>
    %88 = vector.shape_cast %87 : vector<1x1x16xf32> to vector<16xf32>
    %c11_57 = arith.constant 11 : index
    %c0_58 = arith.constant 0 : index
    %c0_59 = arith.constant 0 : index
    %89 = vector.load %arg2[%c11_57, %c0_58, %c0_59] : memref<16x16x16xf32, #tpu.memory_space<vmem>>, vector<1x16x16xf32>
    %90 = vector.shape_cast %89 : vector<1x16x16xf32> to vector<16x16xf32>
    %91 = vector.shape_cast %88 : vector<16xf32> to vector<1x16xf32>
    %92 = vector.broadcast %91 : vector<1x16xf32> to vector<16x16xf32>
    %93 = arith.mulf %92, %90 : vector<16x16xf32>
    %94 = arith.addf %86, %93 : vector<16x16xf32>
    %c0_60 = arith.constant 0 : index
    %c12 = arith.constant 12 : index
    %c0_61 = arith.constant 0 : index
    %95 = vector.load %arg1[%c0_60, %c12, %c0_61] : memref<1x16x16xf32, #tpu.memory_space<vmem>>, vector<1x1x16xf32>
    %96 = vector.shape_cast %95 : vector<1x1x16xf32> to vector<16xf32>
    %c12_62 = arith.constant 12 : index
    %c0_63 = arith.constant 0 : index
    %c0_64 = arith.constant 0 : index
    %97 = vector.load %arg2[%c12_62, %c0_63, %c0_64] : memref<16x16x16xf32, #tpu.memory_space<vmem>>, vector<1x16x16xf32>
    %98 = vector.shape_cast %97 : vector<1x16x16xf32> to vector<16x16xf32>
    %99 = vector.shape_cast %96 : vector<16xf32> to vector<1x16xf32>
    %100 = vector.broadcast %99 : vector<1x16xf32> to vector<16x16xf32>
    %101 = arith.mulf %100, %98 : vector<16x16xf32>
    %102 = arith.addf %94, %101 : vector<16x16xf32>
    %c0_65 = arith.constant 0 : index
    %c13 = arith.constant 13 : index
    %c0_66 = arith.constant 0 : index
    %103 = vector.load %arg1[%c0_65, %c13, %c0_66] : memref<1x16x16xf32, #tpu.memory_space<vmem>>, vector<1x1x16xf32>
    %104 = vector.shape_cast %103 : vector<1x1x16xf32> to vector<16xf32>
    %c13_67 = arith.constant 13 : index
    %c0_68 = arith.constant 0 : index
    %c0_69 = arith.constant 0 : index
    %105 = vector.load %arg2[%c13_67, %c0_68, %c0_69] : memref<16x16x16xf32, #tpu.memory_space<vmem>>, vector<1x16x16xf32>
    %106 = vector.shape_cast %105 : vector<1x16x16xf32> to vector<16x16xf32>
    %107 = vector.shape_cast %104 : vector<16xf32> to vector<1x16xf32>
    %108 = vector.broadcast %107 : vector<1x16xf32> to vector<16x16xf32>
    %109 = arith.mulf %108, %106 : vector<16x16xf32>
    %110 = arith.addf %102, %109 : vector<16x16xf32>
    %c0_70 = arith.constant 0 : index
    %c14 = arith.constant 14 : index
    %c0_71 = arith.constant 0 : index
    %111 = vector.load %arg1[%c0_70, %c14, %c0_71] : memref<1x16x16xf32, #tpu.memory_space<vmem>>, vector<1x1x16xf32>
    %112 = vector.shape_cast %111 : vector<1x1x16xf32> to vector<16xf32>
    %c14_72 = arith.constant 14 : index
    %c0_73 = arith.constant 0 : index
    %c0_74 = arith.constant 0 : index
    %113 = vector.load %arg2[%c14_72, %c0_73, %c0_74] : memref<16x16x16xf32, #tpu.memory_space<vmem>>, vector<1x16x16xf32>
    %114 = vector.shape_cast %113 : vector<1x16x16xf32> to vector<16x16xf32>
    %115 = vector.shape_cast %112 : vector<16xf32> to vector<1x16xf32>
    %116 = vector.broadcast %115 : vector<1x16xf32> to vector<16x16xf32>
    %117 = arith.mulf %116, %114 : vector<16x16xf32>
    %118 = arith.addf %110, %117 : vector<16x16xf32>
    %c0_75 = arith.constant 0 : index
    %c15 = arith.constant 15 : index
    %c0_76 = arith.constant 0 : index
    %119 = vector.load %arg1[%c0_75, %c15, %c0_76] : memref<1x16x16xf32, #tpu.memory_space<vmem>>, vector<1x1x16xf32>
    %120 = vector.shape_cast %119 : vector<1x1x16xf32> to vector<16xf32>
    %c15_77 = arith.constant 15 : index
    %c0_78 = arith.constant 0 : index
    %c0_79 = arith.constant 0 : index
    %121 = vector.load %arg2[%c15_77, %c0_78, %c0_79] : memref<16x16x16xf32, #tpu.memory_space<vmem>>, vector<1x16x16xf32>
    %122 = vector.shape_cast %121 : vector<1x16x16xf32> to vector<16x16xf32>
    %123 = vector.shape_cast %120 : vector<16xf32> to vector<1x16xf32>
    %124 = vector.broadcast %123 : vector<1x16xf32> to vector<16x16xf32>
    %125 = arith.mulf %124, %122 : vector<16x16xf32>
    %126 = arith.addf %118, %125 : vector<16x16xf32>
    %c0_80 = arith.constant 0 : index
    %c0_81 = arith.constant 0 : index
    %127 = vector.load %arg3[%c0_80, %c0_81] : memref<16x5xf32, #tpu.memory_space<vmem>>, vector<16x5xf32>
    %cst = arith.constant dense<0.000000e+00> : vector<16x5xf32>
    %128 = tpu.matmul %126, %127, %cst {dimension_numbers = #tpu.dot_dimension_numbers<[1], [0], [0], [1], [0, 0, 1, 1], [], []>} : vector<16x16xf32>, vector<16x5xf32>, vector<16x5xf32> -> vector<16x5xf32>
    %c0_82 = arith.constant 0 : index
    %c0_83 = arith.constant 0 : index
    %129 = vector.load %arg4[%c0_82, %c0_83] : memref<1x5xf32, #tpu.memory_space<vmem>>, vector<1x5xf32>
    %130 = vector.broadcast %129 : vector<1x5xf32> to vector<16x5xf32>
    %131 = arith.addf %128, %130 : vector<16x5xf32>
    %c0_84 = arith.constant 0 : index
    %c0_85 = arith.constant 0 : index
    %132 = vector.load %arg5[%c0_84, %c0_85] : memref<1x5xf32, #tpu.memory_space<vmem>>, vector<1x5xf32>
    %133 = vector.broadcast %132 : vector<1x5xf32> to vector<16x5xf32>
    %134 = arith.mulf %131, %133 : vector<16x5xf32>
    %c0_86 = arith.constant 0 : index
    %c0_87 = arith.constant 0 : index
    %135 = vector.load %arg6[%c0_86, %c0_87] : memref<1x5xf32, #tpu.memory_space<vmem>>, vector<1x5xf32>
    %136 = vector.broadcast %135 : vector<1x5xf32> to vector<16x5xf32>
    %137 = arith.addf %134, %136 : vector<16x5xf32>
    %cst_88 = arith.constant 5.000000e-01 : f32
    %138 = vector.broadcast %cst_88 : f32 to vector<16x5xf32>
    %139 = arith.mulf %138, %137 : vector<16x5xf32>
    %cst_89 = arith.constant 0.707106769 : f32
    %140 = vector.broadcast %cst_89 : f32 to vector<16x5xf32>
    %141 = arith.mulf %137, %140 : vector<16x5xf32>
    %142 = math.absf %141 : vector<16x5xf32>
    %cst_90 = arith.constant 0.327591091 : f32
    %143 = vector.broadcast %cst_90 : f32 to vector<16x5xf32>
    %144 = arith.mulf %143, %142 : vector<16x5xf32>
    %cst_91 = arith.constant 1.000000e+00 : f32
    %145 = vector.broadcast %cst_91 : f32 to vector<16x5xf32>
    %146 = arith.addf %145, %144 : vector<16x5xf32>
    %cst_92 = arith.constant 1.000000e+00 : f32
    %147 = vector.broadcast %cst_92 : f32 to vector<16x5xf32>
    %148 = arith.divf %147, %146 : vector<16x5xf32>
    %cst_93 = arith.constant 1.06140542 : f32
    %149 = vector.broadcast %cst_93 : f32 to vector<16x5xf32>
    %150 = arith.mulf %149, %148 : vector<16x5xf32>
    %cst_94 = arith.constant -1.45315206 : f32
    %151 = vector.broadcast %cst_94 : f32 to vector<16x5xf32>
    %152 = arith.addf %150, %151 : vector<16x5xf32>
    %153 = arith.mulf %152, %148 : vector<16x5xf32>
    %cst_95 = arith.constant 1.42141378 : f32
    %154 = vector.broadcast %cst_95 : f32 to vector<16x5xf32>
    %155 = arith.addf %153, %154 : vector<16x5xf32>
    %156 = arith.mulf %155, %148 : vector<16x5xf32>
    %cst_96 = arith.constant -0.284496725 : f32
    %157 = vector.broadcast %cst_96 : f32 to vector<16x5xf32>
    %158 = arith.addf %156, %157 : vector<16x5xf32>
    %159 = arith.mulf %158, %148 : vector<16x5xf32>
    %cst_97 = arith.constant 0.254829586 : f32
    %160 = vector.broadcast %cst_97 : f32 to vector<16x5xf32>
    %161 = arith.addf %159, %160 : vector<16x5xf32>
    %162 = arith.mulf %161, %148 : vector<16x5xf32>
    %163 = arith.mulf %141, %141 : vector<16x5xf32>
    %cst_98 = arith.constant 0.000000e+00 : f32
    %164 = vector.broadcast %cst_98 : f32 to vector<16x5xf32>
    %165 = arith.subf %164, %163 : vector<16x5xf32>
    %166 = math.exp %165 : vector<16x5xf32>
    %167 = arith.mulf %162, %166 : vector<16x5xf32>
    %cst_99 = arith.constant 1.000000e+00 : f32
    %168 = vector.broadcast %cst_99 : f32 to vector<16x5xf32>
    %169 = arith.subf %168, %167 : vector<16x5xf32>
    %cst_100 = arith.constant 0.000000e+00 : f32
    %170 = vector.broadcast %cst_100 : f32 to vector<16x5xf32>
    %171 = arith.cmpf oge, %141, %170 : vector<16x5xf32>
    %cst_101 = arith.constant 0.000000e+00 : f32
    %172 = vector.broadcast %cst_101 : f32 to vector<16x5xf32>
    %173 = arith.subf %172, %169 : vector<16x5xf32>
    %174 = arith.select %171, %169, %173 : vector<16x5xi1>, vector<16x5xf32>
    %cst_102 = arith.constant 1.000000e+00 : f32
    %175 = vector.broadcast %cst_102 : f32 to vector<16x5xf32>
    %176 = arith.addf %175, %174 : vector<16x5xf32>
    %177 = arith.mulf %139, %176 : vector<16x5xf32>
    %178 = vector.extract_strided_slice %177 {offsets = [0, 0], sizes = [1, 5], strides = [1, 1]} : vector<16x5xf32> to vector<1x5xf32>
    %179 = vector.shape_cast %178 : vector<1x5xf32> to vector<5xf32>
    %c0_103 = arith.constant 0 : index
    %c0_104 = arith.constant 0 : index
    %c0_105 = arith.constant 0 : index
    %180 = vector.load %arg7[%c0_103, %c0_104, %c0_105] : memref<16x4x5xf32, #tpu.memory_space<vmem>>, vector<1x4x5xf32>
    %181 = vector.shape_cast %180 : vector<1x4x5xf32> to vector<4x5xf32>
    %182 = vector.shape_cast %179 : vector<5xf32> to vector<1x5xf32>
    %183 = vector.broadcast %182 : vector<1x5xf32> to vector<4x5xf32>
    %184 = arith.mulf %183, %181 : vector<4x5xf32>
    %185 = vector.extract_strided_slice %177 {offsets = [1, 0], sizes = [1, 5], strides = [1, 1]} : vector<16x5xf32> to vector<1x5xf32>
    %186 = vector.shape_cast %185 : vector<1x5xf32> to vector<5xf32>
    %c1_106 = arith.constant 1 : index
    %c0_107 = arith.constant 0 : index
    %c0_108 = arith.constant 0 : index
    %187 = vector.load %arg7[%c1_106, %c0_107, %c0_108] : memref<16x4x5xf32, #tpu.memory_space<vmem>>, vector<1x4x5xf32>
    %188 = vector.shape_cast %187 : vector<1x4x5xf32> to vector<4x5xf32>
    %189 = vector.shape_cast %186 : vector<5xf32> to vector<1x5xf32>
    %190 = vector.broadcast %189 : vector<1x5xf32> to vector<4x5xf32>
    %191 = arith.mulf %190, %188 : vector<4x5xf32>
    %192 = arith.addf %184, %191 : vector<4x5xf32>
    %193 = vector.extract_strided_slice %177 {offsets = [2, 0], sizes = [1, 5], strides = [1, 1]} : vector<16x5xf32> to vector<1x5xf32>
    %194 = vector.shape_cast %193 : vector<1x5xf32> to vector<5xf32>
    %c2_109 = arith.constant 2 : index
    %c0_110 = arith.constant 0 : index
    %c0_111 = arith.constant 0 : index
    %195 = vector.load %arg7[%c2_109, %c0_110, %c0_111] : memref<16x4x5xf32, #tpu.memory_space<vmem>>, vector<1x4x5xf32>
    %196 = vector.shape_cast %195 : vector<1x4x5xf32> to vector<4x5xf32>
    %197 = vector.shape_cast %194 : vector<5xf32> to vector<1x5xf32>
    %198 = vector.broadcast %197 : vector<1x5xf32> to vector<4x5xf32>
    %199 = arith.mulf %198, %196 : vector<4x5xf32>
    %200 = arith.addf %192, %199 : vector<4x5xf32>
    %201 = vector.extract_strided_slice %177 {offsets = [3, 0], sizes = [1, 5], strides = [1, 1]} : vector<16x5xf32> to vector<1x5xf32>
    %202 = vector.shape_cast %201 : vector<1x5xf32> to vector<5xf32>
    %c3_112 = arith.constant 3 : index
    %c0_113 = arith.constant 0 : index
    %c0_114 = arith.constant 0 : index
    %203 = vector.load %arg7[%c3_112, %c0_113, %c0_114] : memref<16x4x5xf32, #tpu.memory_space<vmem>>, vector<1x4x5xf32>
    %204 = vector.shape_cast %203 : vector<1x4x5xf32> to vector<4x5xf32>
    %205 = vector.shape_cast %202 : vector<5xf32> to vector<1x5xf32>
    %206 = vector.broadcast %205 : vector<1x5xf32> to vector<4x5xf32>
    %207 = arith.mulf %206, %204 : vector<4x5xf32>
    %208 = arith.addf %200, %207 : vector<4x5xf32>
    %209 = vector.extract_strided_slice %177 {offsets = [4, 0], sizes = [1, 5], strides = [1, 1]} : vector<16x5xf32> to vector<1x5xf32>
    %210 = vector.shape_cast %209 : vector<1x5xf32> to vector<5xf32>
    %c4_115 = arith.constant 4 : index
    %c0_116 = arith.constant 0 : index
    %c0_117 = arith.constant 0 : index
    %211 = vector.load %arg7[%c4_115, %c0_116, %c0_117] : memref<16x4x5xf32, #tpu.memory_space<vmem>>, vector<1x4x5xf32>
    %212 = vector.shape_cast %211 : vector<1x4x5xf32> to vector<4x5xf32>
    %213 = vector.shape_cast %210 : vector<5xf32> to vector<1x5xf32>
    %214 = vector.broadcast %213 : vector<1x5xf32> to vector<4x5xf32>
    %215 = arith.mulf %214, %212 : vector<4x5xf32>
    %216 = arith.addf %208, %215 : vector<4x5xf32>
    %217 = vector.extract_strided_slice %177 {offsets = [5, 0], sizes = [1, 5], strides = [1, 1]} : vector<16x5xf32> to vector<1x5xf32>
    %218 = vector.shape_cast %217 : vector<1x5xf32> to vector<5xf32>
    %c5_118 = arith.constant 5 : index
    %c0_119 = arith.constant 0 : index
    %c0_120 = arith.constant 0 : index
    %219 = vector.load %arg7[%c5_118, %c0_119, %c0_120] : memref<16x4x5xf32, #tpu.memory_space<vmem>>, vector<1x4x5xf32>
    %220 = vector.shape_cast %219 : vector<1x4x5xf32> to vector<4x5xf32>
    %221 = vector.shape_cast %218 : vector<5xf32> to vector<1x5xf32>
    %222 = vector.broadcast %221 : vector<1x5xf32> to vector<4x5xf32>
    %223 = arith.mulf %222, %220 : vector<4x5xf32>
    %224 = arith.addf %216, %223 : vector<4x5xf32>
    %225 = vector.extract_strided_slice %177 {offsets = [6, 0], sizes = [1, 5], strides = [1, 1]} : vector<16x5xf32> to vector<1x5xf32>
    %226 = vector.shape_cast %225 : vector<1x5xf32> to vector<5xf32>
    %c6_121 = arith.constant 6 : index
    %c0_122 = arith.constant 0 : index
    %c0_123 = arith.constant 0 : index
    %227 = vector.load %arg7[%c6_121, %c0_122, %c0_123] : memref<16x4x5xf32, #tpu.memory_space<vmem>>, vector<1x4x5xf32>
    %228 = vector.shape_cast %227 : vector<1x4x5xf32> to vector<4x5xf32>
    %229 = vector.shape_cast %226 : vector<5xf32> to vector<1x5xf32>
    %230 = vector.broadcast %229 : vector<1x5xf32> to vector<4x5xf32>
    %231 = arith.mulf %230, %228 : vector<4x5xf32>
    %232 = arith.addf %224, %231 : vector<4x5xf32>
    %233 = vector.extract_strided_slice %177 {offsets = [7, 0], sizes = [1, 5], strides = [1, 1]} : vector<16x5xf32> to vector<1x5xf32>
    %234 = vector.shape_cast %233 : vector<1x5xf32> to vector<5xf32>
    %c7_124 = arith.constant 7 : index
    %c0_125 = arith.constant 0 : index
    %c0_126 = arith.constant 0 : index
    %235 = vector.load %arg7[%c7_124, %c0_125, %c0_126] : memref<16x4x5xf32, #tpu.memory_space<vmem>>, vector<1x4x5xf32>
    %236 = vector.shape_cast %235 : vector<1x4x5xf32> to vector<4x5xf32>
    %237 = vector.shape_cast %234 : vector<5xf32> to vector<1x5xf32>
    %238 = vector.broadcast %237 : vector<1x5xf32> to vector<4x5xf32>
    %239 = arith.mulf %238, %236 : vector<4x5xf32>
    %240 = arith.addf %232, %239 : vector<4x5xf32>
    %241 = vector.extract_strided_slice %177 {offsets = [8, 0], sizes = [1, 5], strides = [1, 1]} : vector<16x5xf32> to vector<1x5xf32>
    %242 = vector.shape_cast %241 : vector<1x5xf32> to vector<5xf32>
    %c8_127 = arith.constant 8 : index
    %c0_128 = arith.constant 0 : index
    %c0_129 = arith.constant 0 : index
    %243 = vector.load %arg7[%c8_127, %c0_128, %c0_129] : memref<16x4x5xf32, #tpu.memory_space<vmem>>, vector<1x4x5xf32>
    %244 = vector.shape_cast %243 : vector<1x4x5xf32> to vector<4x5xf32>
    %245 = vector.shape_cast %242 : vector<5xf32> to vector<1x5xf32>
    %246 = vector.broadcast %245 : vector<1x5xf32> to vector<4x5xf32>
    %247 = arith.mulf %246, %244 : vector<4x5xf32>
    %248 = arith.addf %240, %247 : vector<4x5xf32>
    %249 = vector.extract_strided_slice %177 {offsets = [9, 0], sizes = [1, 5], strides = [1, 1]} : vector<16x5xf32> to vector<1x5xf32>
    %250 = vector.shape_cast %249 : vector<1x5xf32> to vector<5xf32>
    %c9_130 = arith.constant 9 : index
    %c0_131 = arith.constant 0 : index
    %c0_132 = arith.constant 0 : index
    %251 = vector.load %arg7[%c9_130, %c0_131, %c0_132] : memref<16x4x5xf32, #tpu.memory_space<vmem>>, vector<1x4x5xf32>
    %252 = vector.shape_cast %251 : vector<1x4x5xf32> to vector<4x5xf32>
    %253 = vector.shape_cast %250 : vector<5xf32> to vector<1x5xf32>
    %254 = vector.broadcast %253 : vector<1x5xf32> to vector<4x5xf32>
    %255 = arith.mulf %254, %252 : vector<4x5xf32>
    %256 = arith.addf %248, %255 : vector<4x5xf32>
    %257 = vector.extract_strided_slice %177 {offsets = [10, 0], sizes = [1, 5], strides = [1, 1]} : vector<16x5xf32> to vector<1x5xf32>
    %258 = vector.shape_cast %257 : vector<1x5xf32> to vector<5xf32>
    %c10_133 = arith.constant 10 : index
    %c0_134 = arith.constant 0 : index
    %c0_135 = arith.constant 0 : index
    %259 = vector.load %arg7[%c10_133, %c0_134, %c0_135] : memref<16x4x5xf32, #tpu.memory_space<vmem>>, vector<1x4x5xf32>
    %260 = vector.shape_cast %259 : vector<1x4x5xf32> to vector<4x5xf32>
    %261 = vector.shape_cast %258 : vector<5xf32> to vector<1x5xf32>
    %262 = vector.broadcast %261 : vector<1x5xf32> to vector<4x5xf32>
    %263 = arith.mulf %262, %260 : vector<4x5xf32>
    %264 = arith.addf %256, %263 : vector<4x5xf32>
    %265 = vector.extract_strided_slice %177 {offsets = [11, 0], sizes = [1, 5], strides = [1, 1]} : vector<16x5xf32> to vector<1x5xf32>
    %266 = vector.shape_cast %265 : vector<1x5xf32> to vector<5xf32>
    %c11_136 = arith.constant 11 : index
    %c0_137 = arith.constant 0 : index
    %c0_138 = arith.constant 0 : index
    %267 = vector.load %arg7[%c11_136, %c0_137, %c0_138] : memref<16x4x5xf32, #tpu.memory_space<vmem>>, vector<1x4x5xf32>
    %268 = vector.shape_cast %267 : vector<1x4x5xf32> to vector<4x5xf32>
    %269 = vector.shape_cast %266 : vector<5xf32> to vector<1x5xf32>
    %270 = vector.broadcast %269 : vector<1x5xf32> to vector<4x5xf32>
    %271 = arith.mulf %270, %268 : vector<4x5xf32>
    %272 = arith.addf %264, %271 : vector<4x5xf32>
    %273 = vector.extract_strided_slice %177 {offsets = [12, 0], sizes = [1, 5], strides = [1, 1]} : vector<16x5xf32> to vector<1x5xf32>
    %274 = vector.shape_cast %273 : vector<1x5xf32> to vector<5xf32>
    %c12_139 = arith.constant 12 : index
    %c0_140 = arith.constant 0 : index
    %c0_141 = arith.constant 0 : index
    %275 = vector.load %arg7[%c12_139, %c0_140, %c0_141] : memref<16x4x5xf32, #tpu.memory_space<vmem>>, vector<1x4x5xf32>
    %276 = vector.shape_cast %275 : vector<1x4x5xf32> to vector<4x5xf32>
    %277 = vector.shape_cast %274 : vector<5xf32> to vector<1x5xf32>
    %278 = vector.broadcast %277 : vector<1x5xf32> to vector<4x5xf32>
    %279 = arith.mulf %278, %276 : vector<4x5xf32>
    %280 = arith.addf %272, %279 : vector<4x5xf32>
    %281 = vector.extract_strided_slice %177 {offsets = [13, 0], sizes = [1, 5], strides = [1, 1]} : vector<16x5xf32> to vector<1x5xf32>
    %282 = vector.shape_cast %281 : vector<1x5xf32> to vector<5xf32>
    %c13_142 = arith.constant 13 : index
    %c0_143 = arith.constant 0 : index
    %c0_144 = arith.constant 0 : index
    %283 = vector.load %arg7[%c13_142, %c0_143, %c0_144] : memref<16x4x5xf32, #tpu.memory_space<vmem>>, vector<1x4x5xf32>
    %284 = vector.shape_cast %283 : vector<1x4x5xf32> to vector<4x5xf32>
    %285 = vector.shape_cast %282 : vector<5xf32> to vector<1x5xf32>
    %286 = vector.broadcast %285 : vector<1x5xf32> to vector<4x5xf32>
    %287 = arith.mulf %286, %284 : vector<4x5xf32>
    %288 = arith.addf %280, %287 : vector<4x5xf32>
    %289 = vector.extract_strided_slice %177 {offsets = [14, 0], sizes = [1, 5], strides = [1, 1]} : vector<16x5xf32> to vector<1x5xf32>
    %290 = vector.shape_cast %289 : vector<1x5xf32> to vector<5xf32>
    %c14_145 = arith.constant 14 : index
    %c0_146 = arith.constant 0 : index
    %c0_147 = arith.constant 0 : index
    %291 = vector.load %arg7[%c14_145, %c0_146, %c0_147] : memref<16x4x5xf32, #tpu.memory_space<vmem>>, vector<1x4x5xf32>
    %292 = vector.shape_cast %291 : vector<1x4x5xf32> to vector<4x5xf32>
    %293 = vector.shape_cast %290 : vector<5xf32> to vector<1x5xf32>
    %294 = vector.broadcast %293 : vector<1x5xf32> to vector<4x5xf32>
    %295 = arith.mulf %294, %292 : vector<4x5xf32>
    %296 = arith.addf %288, %295 : vector<4x5xf32>
    %297 = vector.extract_strided_slice %177 {offsets = [15, 0], sizes = [1, 5], strides = [1, 1]} : vector<16x5xf32> to vector<1x5xf32>
    %298 = vector.shape_cast %297 : vector<1x5xf32> to vector<5xf32>
    %c15_148 = arith.constant 15 : index
    %c0_149 = arith.constant 0 : index
    %c0_150 = arith.constant 0 : index
    %299 = vector.load %arg7[%c15_148, %c0_149, %c0_150] : memref<16x4x5xf32, #tpu.memory_space<vmem>>, vector<1x4x5xf32>
    %300 = vector.shape_cast %299 : vector<1x4x5xf32> to vector<4x5xf32>
    %301 = vector.shape_cast %298 : vector<5xf32> to vector<1x5xf32>
    %302 = vector.broadcast %301 : vector<1x5xf32> to vector<4x5xf32>
    %303 = arith.mulf %302, %300 : vector<4x5xf32>
    %304 = arith.addf %296, %303 : vector<4x5xf32>
    %c0_151 = arith.constant 0 : index
    %c0_152 = arith.constant 0 : index
    %305 = vector.load %arg8[%c0_151, %c0_152] : memref<1x5xf32, #tpu.memory_space<vmem>>, vector<1x5xf32>
    %306 = vector.broadcast %305 : vector<1x5xf32> to vector<4x5xf32>
    %307 = arith.addf %304, %306 : vector<4x5xf32>
    %308 = vector.extract_strided_slice %131 {offsets = [0, 0], sizes = [4, 5], strides = [1, 1]} : vector<16x5xf32> to vector<4x5xf32>
    %309 = vector.extract_strided_slice %131 {offsets = [4, 0], sizes = [4, 5], strides = [1, 1]} : vector<16x5xf32> to vector<4x5xf32>
    %310 = vector.extract_strided_slice %131 {offsets = [8, 0], sizes = [4, 5], strides = [1, 1]} : vector<16x5xf32> to vector<4x5xf32>
    %311 = vector.extract_strided_slice %131 {offsets = [12, 0], sizes = [4, 5], strides = [1, 1]} : vector<16x5xf32> to vector<4x5xf32>
    %c0_153 = arith.constant 0 : index
    %c0_154 = arith.constant 0 : index
    %312 = vector.load %arg9[%c0_153, %c0_154] : memref<3x5xf32, #tpu.memory_space<vmem>>, vector<1x5xf32>
    %313 = vector.shape_cast %312 : vector<1x5xf32> to vector<5xf32>
    %c1_155 = arith.constant 1 : index
    %c0_156 = arith.constant 0 : index
    %314 = vector.load %arg9[%c1_155, %c0_156] : memref<3x5xf32, #tpu.memory_space<vmem>>, vector<1x5xf32>
    %315 = vector.shape_cast %314 : vector<1x5xf32> to vector<5xf32>
    %c2_157 = arith.constant 2 : index
    %c0_158 = arith.constant 0 : index
    %316 = vector.load %arg9[%c2_157, %c0_158] : memref<3x5xf32, #tpu.memory_space<vmem>>, vector<1x5xf32>
    %317 = vector.shape_cast %316 : vector<1x5xf32> to vector<5xf32>
    %318 = vector.shape_cast %313 : vector<5xf32> to vector<1x5xf32>
    %319 = vector.broadcast %318 : vector<1x5xf32> to vector<4x5xf32>
    %320 = arith.mulf %307, %319 : vector<4x5xf32>
    %cst_159 = arith.constant dense<0.000000e+00> : vector<4xf32>
    %321 = vector.multi_reduction <add>, %320, %cst_159 [1] : vector<4x5xf32> to vector<4xf32>
    %322 = vector.shape_cast %313 : vector<5xf32> to vector<1x5xf32>
    %323 = vector.broadcast %322 : vector<1x5xf32> to vector<4x5xf32>
    %324 = arith.mulf %308, %323 : vector<4x5xf32>
    %cst_160 = arith.constant dense<0.000000e+00> : vector<4xf32>
    %325 = vector.multi_reduction <add>, %324, %cst_160 [1] : vector<4x5xf32> to vector<4xf32>
    %326 = vector.shape_cast %313 : vector<5xf32> to vector<1x5xf32>
    %327 = vector.broadcast %326 : vector<1x5xf32> to vector<4x5xf32>
    %328 = arith.mulf %309, %327 : vector<4x5xf32>
    %cst_161 = arith.constant dense<0.000000e+00> : vector<4xf32>
    %329 = vector.multi_reduction <add>, %328, %cst_161 [1] : vector<4x5xf32> to vector<4xf32>
    %330 = vector.shape_cast %313 : vector<5xf32> to vector<1x5xf32>
    %331 = vector.broadcast %330 : vector<1x5xf32> to vector<4x5xf32>
    %332 = arith.mulf %310, %331 : vector<4x5xf32>
    %cst_162 = arith.constant dense<0.000000e+00> : vector<4xf32>
    %333 = vector.multi_reduction <add>, %332, %cst_162 [1] : vector<4x5xf32> to vector<4xf32>
    %334 = vector.shape_cast %313 : vector<5xf32> to vector<1x5xf32>
    %335 = vector.broadcast %334 : vector<1x5xf32> to vector<4x5xf32>
    %336 = arith.mulf %311, %335 : vector<4x5xf32>
    %cst_163 = arith.constant dense<0.000000e+00> : vector<4xf32>
    %337 = vector.multi_reduction <add>, %336, %cst_163 [1] : vector<4x5xf32> to vector<4xf32>
    %338 = vector.shape_cast %321 : vector<4xf32> to vector<1x4xf32>
    %339 = vector.shape_cast %325 : vector<4xf32> to vector<1x4xf32>
    %340 = vector.shape_cast %329 : vector<4xf32> to vector<1x4xf32>
    %341 = vector.shape_cast %333 : vector<4xf32> to vector<1x4xf32>
    %342 = vector.shape_cast %337 : vector<4xf32> to vector<1x4xf32>
    %343 = tpu.concatenate %338, %339, %340, %341, %342 in 0 : vector<1x4xf32>, vector<1x4xf32>, vector<1x4xf32>, vector<1x4xf32>, vector<1x4xf32> -> vector<5x4xf32>
    %c0_164 = arith.constant 0 : index
    %c0_165 = arith.constant 0 : index
    %344 = vector.load %arg10[%c0_164, %c0_165] : memref<1x3xf32, #tpu.memory_space<vmem>>, vector<1x1xf32>
    %345 = vector.broadcast %344 : vector<1x1xf32> to vector<5x4xf32>
    %346 = arith.addf %343, %345 : vector<5x4xf32>
    %347 = vector.shape_cast %315 : vector<5xf32> to vector<1x5xf32>
    %348 = vector.broadcast %347 : vector<1x5xf32> to vector<4x5xf32>
    %349 = arith.mulf %307, %348 : vector<4x5xf32>
    %cst_166 = arith.constant dense<0.000000e+00> : vector<4xf32>
    %350 = vector.multi_reduction <add>, %349, %cst_166 [1] : vector<4x5xf32> to vector<4xf32>
    %351 = vector.shape_cast %315 : vector<5xf32> to vector<1x5xf32>
    %352 = vector.broadcast %351 : vector<1x5xf32> to vector<4x5xf32>
    %353 = arith.mulf %308, %352 : vector<4x5xf32>
    %cst_167 = arith.constant dense<0.000000e+00> : vector<4xf32>
    %354 = vector.multi_reduction <add>, %353, %cst_167 [1] : vector<4x5xf32> to vector<4xf32>
    %355 = vector.shape_cast %315 : vector<5xf32> to vector<1x5xf32>
    %356 = vector.broadcast %355 : vector<1x5xf32> to vector<4x5xf32>
    %357 = arith.mulf %309, %356 : vector<4x5xf32>
    %cst_168 = arith.constant dense<0.000000e+00> : vector<4xf32>
    %358 = vector.multi_reduction <add>, %357, %cst_168 [1] : vector<4x5xf32> to vector<4xf32>
    %359 = vector.shape_cast %315 : vector<5xf32> to vector<1x5xf32>
    %360 = vector.broadcast %359 : vector<1x5xf32> to vector<4x5xf32>
    %361 = arith.mulf %310, %360 : vector<4x5xf32>
    %cst_169 = arith.constant dense<0.000000e+00> : vector<4xf32>
    %362 = vector.multi_reduction <add>, %361, %cst_169 [1] : vector<4x5xf32> to vector<4xf32>
    %363 = vector.shape_cast %315 : vector<5xf32> to vector<1x5xf32>
    %364 = vector.broadcast %363 : vector<1x5xf32> to vector<4x5xf32>
    %365 = arith.mulf %311, %364 : vector<4x5xf32>
    %cst_170 = arith.constant dense<0.000000e+00> : vector<4xf32>
    %366 = vector.multi_reduction <add>, %365, %cst_170 [1] : vector<4x5xf32> to vector<4xf32>
    %367 = vector.shape_cast %350 : vector<4xf32> to vector<1x4xf32>
    %368 = vector.shape_cast %354 : vector<4xf32> to vector<1x4xf32>
    %369 = vector.shape_cast %358 : vector<4xf32> to vector<1x4xf32>
    %370 = vector.shape_cast %362 : vector<4xf32> to vector<1x4xf32>
    %371 = vector.shape_cast %366 : vector<4xf32> to vector<1x4xf32>
    %372 = tpu.concatenate %367, %368, %369, %370, %371 in 0 : vector<1x4xf32>, vector<1x4xf32>, vector<1x4xf32>, vector<1x4xf32>, vector<1x4xf32> -> vector<5x4xf32>
    %c0_171 = arith.constant 0 : index
    %c1_172 = arith.constant 1 : index
    %373 = vector.load %arg10[%c0_171, %c1_172] : memref<1x3xf32, #tpu.memory_space<vmem>>, vector<1x1xf32>
    %374 = vector.broadcast %373 : vector<1x1xf32> to vector<5x4xf32>
    %375 = arith.addf %372, %374 : vector<5x4xf32>
    %376 = vector.shape_cast %317 : vector<5xf32> to vector<1x5xf32>
    %377 = vector.broadcast %376 : vector<1x5xf32> to vector<4x5xf32>
    %378 = arith.mulf %307, %377 : vector<4x5xf32>
    %cst_173 = arith.constant dense<0.000000e+00> : vector<4xf32>
    %379 = vector.multi_reduction <add>, %378, %cst_173 [1] : vector<4x5xf32> to vector<4xf32>
    %380 = vector.shape_cast %317 : vector<5xf32> to vector<1x5xf32>
    %381 = vector.broadcast %380 : vector<1x5xf32> to vector<4x5xf32>
    %382 = arith.mulf %308, %381 : vector<4x5xf32>
    %cst_174 = arith.constant dense<0.000000e+00> : vector<4xf32>
    %383 = vector.multi_reduction <add>, %382, %cst_174 [1] : vector<4x5xf32> to vector<4xf32>
    %384 = vector.shape_cast %317 : vector<5xf32> to vector<1x5xf32>
    %385 = vector.broadcast %384 : vector<1x5xf32> to vector<4x5xf32>
    %386 = arith.mulf %309, %385 : vector<4x5xf32>
    %cst_175 = arith.constant dense<0.000000e+00> : vector<4xf32>
    %387 = vector.multi_reduction <add>, %386, %cst_175 [1] : vector<4x5xf32> to vector<4xf32>
    %388 = vector.shape_cast %317 : vector<5xf32> to vector<1x5xf32>
    %389 = vector.broadcast %388 : vector<1x5xf32> to vector<4x5xf32>
    %390 = arith.mulf %310, %389 : vector<4x5xf32>
    %cst_176 = arith.constant dense<0.000000e+00> : vector<4xf32>
    %391 = vector.multi_reduction <add>, %390, %cst_176 [1] : vector<4x5xf32> to vector<4xf32>
    %392 = vector.shape_cast %317 : vector<5xf32> to vector<1x5xf32>
    %393 = vector.broadcast %392 : vector<1x5xf32> to vector<4x5xf32>
    %394 = arith.mulf %311, %393 : vector<4x5xf32>
    %cst_177 = arith.constant dense<0.000000e+00> : vector<4xf32>
    %395 = vector.multi_reduction <add>, %394, %cst_177 [1] : vector<4x5xf32> to vector<4xf32>
    %396 = vector.shape_cast %379 : vector<4xf32> to vector<1x4xf32>
    %397 = vector.shape_cast %383 : vector<4xf32> to vector<1x4xf32>
    %398 = vector.shape_cast %387 : vector<4xf32> to vector<1x4xf32>
    %399 = vector.shape_cast %391 : vector<4xf32> to vector<1x4xf32>
    %400 = vector.shape_cast %395 : vector<4xf32> to vector<1x4xf32>
    %401 = tpu.concatenate %396, %397, %398, %399, %400 in 0 : vector<1x4xf32>, vector<1x4xf32>, vector<1x4xf32>, vector<1x4xf32>, vector<1x4xf32> -> vector<5x4xf32>
    %c0_178 = arith.constant 0 : index
    %c2_179 = arith.constant 2 : index
    %402 = vector.load %arg10[%c0_178, %c2_179] : memref<1x3xf32, #tpu.memory_space<vmem>>, vector<1x1xf32>
    %403 = vector.broadcast %402 : vector<1x1xf32> to vector<5x4xf32>
    %404 = arith.addf %401, %403 : vector<5x4xf32>
    %cst_180 = arith.constant dense<0.000000e+00> : vector<5x5xf32>
    %405 = tpu.matmul %346, %375, %cst_180 {dimension_numbers = #tpu.dot_dimension_numbers<[1], [1], [0], [0], [0, 0, 1, 0], [], []>} : vector<5x4xf32>, vector<5x4xf32>, vector<5x5xf32> -> vector<5x5xf32>
    %cst_181 = arith.constant dense<0xFF800000> : vector<5xf32>
    %406 = vector.multi_reduction <maximumf>, %405, %cst_181 [1] : vector<5x5xf32> to vector<5xf32>
    %407 = vector.shape_cast %406 : vector<5xf32> to vector<5x1xf32>
    %408 = vector.broadcast %407 : vector<5x1xf32> to vector<5x5xf32>
    %409 = arith.subf %405, %408 : vector<5x5xf32>
    %410 = math.exp %409 : vector<5x5xf32>
    %cst_182 = arith.constant dense<0.000000e+00> : vector<5xf32>
    %411 = vector.multi_reduction <add>, %410, %cst_182 [1] : vector<5x5xf32> to vector<5xf32>
    %412 = vector.shape_cast %411 : vector<5xf32> to vector<5x1xf32>
    %413 = tpu.reciprocal %412 : vector<5x1xf32> -> vector<5x1xf32>
    %414 = vector.broadcast %413 : vector<5x1xf32> to vector<5x5xf32>
    %415 = arith.mulf %410, %414 : vector<5x5xf32>
    %cst_183 = arith.constant dense<0.000000e+00> : vector<5x4xf32>
    %416 = tpu.matmul %415, %404, %cst_183 {dimension_numbers = #tpu.dot_dimension_numbers<[1], [0], [0], [1], [0, 0, 1, 1], [], []>} : vector<5x5xf32>, vector<5x4xf32>, vector<5x4xf32> -> vector<5x4xf32>
    %c0_184 = arith.constant 0 : index
    %c0_185 = arith.constant 0 : index
    %417 = vector.load %arg11[%c0_184, %c0_185] : memref<5x5xf32, #tpu.memory_space<vmem>>, vector<5x5xf32>
    %cst_186 = arith.constant dense<0.000000e+00> : vector<5x4xf32>
    %418 = tpu.matmul %417, %416, %cst_186 {dimension_numbers = #tpu.dot_dimension_numbers<[1], [0], [0], [1], [0, 0, 1, 1], [], []>} : vector<5x5xf32>, vector<5x4xf32>, vector<5x4xf32> -> vector<5x4xf32>
    %c0_187 = arith.constant 0 : index
    %c0_188 = arith.constant 0 : index
    %419 = vector.load %arg12[%c0_187, %c0_188] : memref<5x1xf32, #tpu.memory_space<vmem>>, vector<5x1xf32>
    %420 = vector.broadcast %419 : vector<5x1xf32> to vector<5x4xf32>
    %421 = arith.addf %418, %420 : vector<5x4xf32>
    %c0_189 = arith.constant 0 : index
    %c0_190 = arith.constant 0 : index
    %c0_191 = arith.constant 0 : index
    %422 = vector.load %arg13[%c0_189, %c0_190, %c0_191] : memref<1x5x4xf32, #tpu.memory_space<vmem>>, vector<1x5x4xf32>
    %423 = vector.shape_cast %422 : vector<1x5x4xf32> to vector<5x4xf32>
    %424 = vector.shape_cast %421 : vector<5x4xf32> to vector<1x5x4xf32>
    tpu.vector_store %arg13[%c0_189, %c0_190, %c0_191], %424 {strides = array<i32>} : memref<1x5x4xf32, #tpu.memory_space<vmem>>, vector<1x5x4xf32>,
    return
  }
  func.func @transform_0(%arg0: i32) -> (i32, i32, i32) {
    %c0_i32 = arith.constant 0 : i32
    %c0_i32_0 = arith.constant 0 : i32
    %c0_i32_1 = arith.constant 0 : i32
    return %arg0, %c0_i32, %c0_i32_0 : i32, i32, i32
  }
  func.func @transform_1(%arg0: i32) -> (i32, i32, i32) {
    %c0_i32 = arith.constant 0 : i32
    %c0_i32_0 = arith.constant 0 : i32
    %c0_i32_1 = arith.constant 0 : i32
    %c0_i32_2 = arith.constant 0 : i32
    return %c0_i32, %c0_i32_0, %c0_i32_1 : i32, i32, i32
  }
  func.func @transform_2(%arg0: i32) -> (i32, i32) {
    %c0_i32 = arith.constant 0 : i32
    %c0_i32_0 = arith.constant 0 : i32
    %c0_i32_1 = arith.constant 0 : i32
    return %c0_i32, %c0_i32_0 : i32, i32
  }
  func.func @transform_3(%arg0: i32) -> (i32, i32) {
    %c0_i32 = arith.constant 0 : i32
    %c0_i32_0 = arith.constant 0 : i32
    %c0_i32_1 = arith.constant 0 : i32
    return %c0_i32, %c0_i32_0 : i32, i32
  }
  func.func @transform_4(%arg0: i32) -> (i32, i32) {
    %c0_i32 = arith.constant 0 : i32
    %c0_i32_0 = arith.constant 0 : i32
    %c0_i32_1 = arith.constant 0 : i32
    return %c0_i32, %c0_i32_0 : i32, i32
  }
  func.func @transform_5(%arg0: i32) -> (i32, i32) {
    %c0_i32 = arith.constant 0 : i32
    %c0_i32_0 = arith.constant 0 : i32
    %c0_i32_1 = arith.constant 0 : i32
    return %c0_i32, %c0_i32_0 : i32, i32
  }
  func.func @transform_6(%arg0: i32) -> (i32, i32, i32) {
    %c0_i32 = arith.constant 0 : i32
    %c0_i32_0 = arith.constant 0 : i32
    %c0_i32_1 = arith.constant 0 : i32
    %c0_i32_2 = arith.constant 0 : i32
    return %c0_i32, %c0_i32_0, %c0_i32_1 : i32, i32, i32
  }
  func.func @transform_7(%arg0: i32) -> (i32, i32) {
    %c0_i32 = arith.constant 0 : i32
    %c0_i32_0 = arith.constant 0 : i32
    %c0_i32_1 = arith.constant 0 : i32
    return %c0_i32, %c0_i32_0 : i32, i32
  }
  func.func @transform_8(%arg0: i32) -> (i32, i32) {
    %c0_i32 = arith.constant 0 : i32
    %c0_i32_0 = arith.constant 0 : i32
    %c0_i32_1 = arith.constant 0 : i32
    return %c0_i32, %c0_i32_0 : i32, i32
  }
  func.func @transform_9(%arg0: i32) -> (i32, i32) {
    %c0_i32 = arith.constant 0 : i32
    %c0_i32_0 = arith.constant 0 : i32
    %c0_i32_1 = arith.constant 0 : i32
    return %c0_i32, %c0_i32_0 : i32, i32
  }
  func.func @transform_10(%arg0: i32) -> (i32, i32) {
    %c0_i32 = arith.constant 0 : i32
    %c0_i32_0 = arith.constant 0 : i32
    %c0_i32_1 = arith.constant 0 : i32
    return %c0_i32, %c0_i32_0 : i32, i32
  }
  func.func @transform_11(%arg0: i32) -> (i32, i32) {
    %c0_i32 = arith.constant 0 : i32
    %c0_i32_0 = arith.constant 0 : i32
    %c0_i32_1 = arith.constant 0 : i32
    return %c0_i32, %c0_i32_0 : i32, i32
  }
  func.func @transform_12(%arg0: i32) -> (i32, i32, i32) {
    %c0_i32 = arith.constant 0 : i32
    %c0_i32_0 = arith.constant 0 : i32
    %c0_i32_1 = arith.constant 0 : i32
    return %arg0, %c0_i32, %c0_i32_0 : i32, i32, i32
  }
}

</mosaic_0001>

<llo_original>
// kernel: stepwise_patch_merging.1
$region0: #{stepwise_patch_merging.1}
  #allocation0 [shape = 'u32[]', space=smem, size = 0x4, offset = 0x4, fixed_abs, tag = 'smem constant byte address 0x4 - core index']
  #allocation1 [shape = 'u32[144,128]{1,0:T(1,128)}', space=vmem, size = 0x12000, scoped, tag = 'internal scratch']
  %s0 = inlined_call_operand.vmem [shape: f32[2,16,16], index: 0, kind: input, shape index: {}]
  %s1 = inlined_call_operand.vmem [shape: f32[16,16,16], index: 1, kind: input, shape index: {}]
  %s2 = inlined_call_operand.vmem [shape: f32[16,5], index: 2, kind: input, shape index: {}]
  %s3 = inlined_call_operand.vmem [shape: f32[1,5], index: 3, kind: input, shape index: {}]
  %s4 = inlined_call_operand.vmem [shape: f32[1,5], index: 4, kind: input, shape index: {}]
  %s5 = inlined_call_operand.vmem [shape: f32[1,5], index: 5, kind: input, shape index: {}]
  %s6 = inlined_call_operand.vmem [shape: f32[16,4,5], index: 6, kind: input, shape index: {}]
  %s7 = inlined_call_operand.vmem [shape: f32[1,5], index: 7, kind: input, shape index: {}]
  %s8 = inlined_call_operand.vmem [shape: f32[3,5], index: 8, kind: input, shape index: {}]
  %s9 = inlined_call_operand.vmem [shape: f32[1,3], index: 9, kind: input, shape index: {}]
  %s10 = inlined_call_operand.vmem [shape: f32[5,5], index: 10, kind: input, shape index: {}]
  %s11 = inlined_call_operand.vmem [shape: f32[5,1], index: 11, kind: input, shape index: {}]
  %s12 = inlined_call_operand.vmem [shape: f32[2,5,4], index: 12, kind: output, shape index: {}]
  %s13 = sld [smem:[#allocation0]]
  $region81: #{stepwise_patch_merging.1} parent=0
    _
  %s15 = ssub.s32 1, %s13
  %s16 = scalar_select 0, %s15, %s13
  loop: start=0, step=1, limit=4
  $region2: #{stepwise_patch_merging.1} parent=0 // loop_pre_header
    _
  $region3: #{stepwise_patch_merging.1} parent=0 // loop_header
    %s18 = sphi 0, %s22
    %p19 = scmp.ge.s32.totalorder %s18, 4
    %s28 = sphi 0, %s30
    %s31 = sphi 0, %s28
    %s32 = sphi 0, %s31
    %s48 = sphi 0, %s32
    %s52 = sphi 0, %s52
    %s54 = sphi 0, %s52
    %s55 = sphi 0, %s54
    %s69 = sphi 0, %s55
    %s73 = sphi 0, %s73
    %s75 = sphi 0, %s73
    %s76 = sphi 0, %s75
    %s90 = sphi 0, %s76
    %s94 = sphi 0, %s94
    %s96 = sphi 0, %s94
    %s97 = sphi 0, %s96
    %s111 = sphi 0, %s97
    %s115 = sphi 0, %s115
    %s117 = sphi 0, %s115
    %s118 = sphi 0, %s117
    %s132 = sphi 0, %s118
    %s136 = sphi 0, %s136
    %s138 = sphi 0, %s136
    %s139 = sphi 0, %s138
    %s153 = sphi 0, %s139
    %s157 = sphi 0, %s157
    %s159 = sphi 0, %s157
    %s160 = sphi 0, %s159
    %s174 = sphi 0, %s160
    %s178 = sphi 0, %s178
    %s180 = sphi 0, %s178
    %s181 = sphi 0, %s180
    %s195 = sphi 0, %s181
    %s199 = sphi 0, %s199
    %s201 = sphi 0, %s199
    %s202 = sphi 0, %s201
    %s216 = sphi 0, %s202
    %s220 = sphi 0, %s220
    %s222 = sphi 0, %s220
    %s223 = sphi 0, %s222
    %s237 = sphi 0, %s223
    %s241 = sphi 0, %s241
    %s243 = sphi 0, %s241
    %s244 = sphi 0, %s243
    %s258 = sphi 0, %s244
    %s262 = sphi 0, %s262
    %s264 = sphi 0, %s262
    %s265 = sphi 0, %s264
    %s279 = sphi 0, %s265
    %s285 = sphi 0, %s287
    %s288 = sphi 0, %s285
    %s289 = sphi 0, %s288
    %s305 = sphi 0, %s289
  $region4: #{stepwise_patch_merging.1} parent=0 // loop_header_branch
    %21 = sbr.rel (%p19) target = $region8
  $region5: #{stepwise_patch_merging.1} parent=0 // loop_body
    %s23 = ssub.s32 %s18, 1
    %s24 = ssub.s32 %s18, 2
    %s25 = sadd.s32 %s18, 1
    %s26 = ssub.s32 %s18, %s25
    %p27 = scmp.eq.s32.totalorder %s26, 0
    %s29 = sadd.s32 %s28, 1
    %s30 = scalar_select %p27, %s28, %s29
    %p33 = pneg %p27
    %p34 = scmp.eq.s32.totalorder %s18, 1
    %p35 = por %p33, %p34
    %p36 = scmp.ne.s32.totalorder %s28, %s31
    %p37 = scmp.eq.s32.totalorder %s18, 0
    %p38 = por %p36, %p37
    %p39 = scmp.ne.s32.totalorder %s28, %s31
    %p40 = scmp.eq.s32.totalorder %s23, 1
    %p41 = por %p39, %p40
    %p42 = scmp.ne.s32.totalorder %s31, %s32
    %p43 = scmp.eq.s32.totalorder %s23, 0
    %p44 = por %p42, %p43
    %p45 = scmp.ne.s32.totalorder %s31, %s32
    %p46 = scmp.eq.s32.totalorder %s24, 1
    %p47 = por %p45, %p46
    %p49 = scmp.ne.s32.totalorder %s32, %s48
    %p50 = scmp.eq.s32.totalorder %s24, 0
    %p51 = por %p49, %p50
    %s53 = sadd.s32 %s52, 1
    %p56 = scmp.eq.s32.totalorder %s18, 1
    %p57 = scmp.ne.s32.totalorder %s52, %s54
    %p58 = scmp.eq.s32.totalorder %s18, 0
    %p59 = por %p57, %p58
    %p60 = scmp.ne.s32.totalorder %s52, %s54
    %p61 = scmp.eq.s32.totalorder %s23, 1
    %p62 = por %p60, %p61
    %p63 = scmp.ne.s32.totalorder %s54, %s55
    %p64 = scmp.eq.s32.totalorder %s23, 0
    %p65 = por %p63, %p64
    %p66 = scmp.ne.s32.totalorder %s54, %s55
    %p67 = scmp.eq.s32.totalorder %s24, 1
    %p68 = por %p66, %p67
    %p70 = scmp.ne.s32.totalorder %s55, %s69
    %p71 = scmp.eq.s32.totalorder %s24, 0
    %p72 = por %p70, %p71
    %s74 = sadd.s32 %s73, 1
    %p77 = scmp.eq.s32.totalorder %s18, 1
    %p78 = scmp.ne.s32.totalorder %s73, %s75
    %p79 = scmp.eq.s32.totalorder %s18, 0
    %p80 = por %p78, %p79
    %p81 = scmp.ne.s32.totalorder %s73, %s75
    %p82 = scmp.eq.s32.totalorder %s23, 1
    %p83 = por %p81, %p82
    %p84 = scmp.ne.s32.totalorder %s75, %s76
    %p85 = scmp.eq.s32.totalorder %s23, 0
    %p86 = por %p84, %p85
    %p87 = scmp.ne.s32.totalorder %s75, %s76
    %p88 = scmp.eq.s32.totalorder %s24, 1
    %p89 = por %p87, %p88
    %p91 = scmp.ne.s32.totalorder %s76, %s90
    %p92 = scmp.eq.s32.totalorder %s24, 0
    %p93 = por %p91, %p92
    %s95 = sadd.s32 %s94, 1
    %p98 = scmp.eq.s32.totalorder %s18, 1
    %p99 = scmp.ne.s32.totalorder %s94, %s96
    %p100 = scmp.eq.s32.totalorder %s18, 0
    %p101 = por %p99, %p100
    %p102 = scmp.ne.s32.totalorder %s94, %s96
    %p103 = scmp.eq.s32.totalorder %s23, 1
    %p104 = por %p102, %p103
    %p105 = scmp.ne.s32.totalorder %s96, %s97
    %p106 = scmp.eq.s32.totalorder %s23, 0
    %p107 = por %p105, %p106
    %p108 = scmp.ne.s32.totalorder %s96, %s97
    %p109 = scmp.eq.s32.totalorder %s24, 1
    %p110 = por %p108, %p109
    %p112 = scmp.ne.s32.totalorder %s97, %s111
    %p113 = scmp.eq.s32.totalorder %s24, 0
    %p114 = por %p112, %p113
    %s116 = sadd.s32 %s115, 1
    %p119 = scmp.eq.s32.totalorder %s18, 1
    %p120 = scmp.ne.s32.totalorder %s115, %s117
    %p121 = scmp.eq.s32.totalorder %s18, 0
    %p122 = por %p120, %p121
    %p123 = scmp.ne.s32.totalorder %s115, %s117
    %p124 = scmp.eq.s32.totalorder %s23, 1
    %p125 = por %p123, %p124
    %p126 = scmp.ne.s32.totalorder %s117, %s118
    %p127 = scmp.eq.s32.totalorder %s23, 0
    %p128 = por %p126, %p127
    %p129 = scmp.ne.s32.totalorder %s117, %s118
    %p130 = scmp.eq.s32.totalorder %s24, 1
    %p131 = por %p129, %p130
    %p133 = scmp.ne.s32.totalorder %s118, %s132
    %p134 = scmp.eq.s32.totalorder %s24, 0
    %p135 = por %p133, %p134
    %s137 = sadd.s32 %s136, 1
    %p140 = scmp.eq.s32.totalorder %s18, 1
    %p141 = scmp.ne.s32.totalorder %s136, %s138
    %p142 = scmp.eq.s32.totalorder %s18, 0
    %p143 = por %p141, %p142
    %p144 = scmp.ne.s32.totalorder %s136, %s138
    %p145 = scmp.eq.s32.totalorder %s23, 1
    %p146 = por %p144, %p145
    %p147 = scmp.ne.s32.totalorder %s138, %s139
    %p148 = scmp.eq.s32.totalorder %s23, 0
    %p149 = por %p147, %p148
    %p150 = scmp.ne.s32.totalorder %s138, %s139
    %p151 = scmp.eq.s32.totalorder %s24, 1
    %p152 = por %p150, %p151
    %p154 = scmp.ne.s32.totalorder %s139, %s153
    %p155 = scmp.eq.s32.totalorder %s24, 0
    %p156 = por %p154, %p155
    %s158 = sadd.s32 %s157, 1
    %p161 = scmp.eq.s32.totalorder %s18, 1
    %p162 = scmp.ne.s32.totalorder %s157, %s159
    %p163 = scmp.eq.s32.totalorder %s18, 0
    %p164 = por %p162, %p163
    %p165 = scmp.ne.s32.totalorder %s157, %s159
    %p166 = scmp.eq.s32.totalorder %s23, 1
    %p167 = por %p165, %p166
    %p168 = scmp.ne.s32.totalorder %s159, %s160
    %p169 = scmp.eq.s32.totalorder %s23, 0
    %p170 = por %p168, %p169
    %p171 = scmp.ne.s32.totalorder %s159, %s160
    %p172 = scmp.eq.s32.totalorder %s24, 1
    %p173 = por %p171, %p172
    %p175 = scmp.ne.s32.totalorder %s160, %s174
    %p176 = scmp.eq.s32.totalorder %s24, 0
    %p177 = por %p175, %p176
    %s179 = sadd.s32 %s178, 1
    %p182 = scmp.eq.s32.totalorder %s18, 1
    %p183 = scmp.ne.s32.totalorder %s178, %s180
    %p184 = scmp.eq.s32.totalorder %s18, 0
    %p185 = por %p183, %p184
    %p186 = scmp.ne.s32.totalorder %s178, %s180
    %p187 = scmp.eq.s32.totalorder %s23, 1
    %p188 = por %p186, %p187
    %p189 = scmp.ne.s32.totalorder %s180, %s181
    %p190 = scmp.eq.s32.totalorder %s23, 0
    %p191 = por %p189, %p190
    %p192 = scmp.ne.s32.totalorder %s180, %s181
    %p193 = scmp.eq.s32.totalorder %s24, 1
    %p194 = por %p192, %p193
    %p196 = scmp.ne.s32.totalorder %s181, %s195
    %p197 = scmp.eq.s32.totalorder %s24, 0
    %p198 = por %p196, %p197
    %s200 = sadd.s32 %s199, 1
    %p203 = scmp.eq.s32.totalorder %s18, 1
    %p204 = scmp.ne.s32.totalorder %s199, %s201
    %p205 = scmp.eq.s32.totalorder %s18, 0
    %p206 = por %p204, %p205
    %p207 = scmp.ne.s32.totalorder %s199, %s201
    %p208 = scmp.eq.s32.totalorder %s23, 1
    %p209 = por %p207, %p208
    %p210 = scmp.ne.s32.totalorder %s201, %s202
    %p211 = scmp.eq.s32.totalorder %s23, 0
    %p212 = por %p210, %p211
    %p213 = scmp.ne.s32.totalorder %s201, %s202
    %p214 = scmp.eq.s32.totalorder %s24, 1
    %p215 = por %p213, %p214
    %p217 = scmp.ne.s32.totalorder %s202, %s216
    %p218 = scmp.eq.s32.totalorder %s24, 0
    %p219 = por %p217, %p218
    %s221 = sadd.s32 %s220, 1
    %p224 = scmp.eq.s32.totalorder %s18, 1
    %p225 = scmp.ne.s32.totalorder %s220, %s222
    %p226 = scmp.eq.s32.totalorder %s18, 0
    %p227 = por %p225, %p226
    %p228 = scmp.ne.s32.totalorder %s220, %s222
    %p229 = scmp.eq.s32.totalorder %s23, 1
    %p230 = por %p228, %p229
    %p231 = scmp.ne.s32.totalorder %s222, %s223
    %p232 = scmp.eq.s32.totalorder %s23, 0
    %p233 = por %p231, %p232
    %p234 = scmp.ne.s32.totalorder %s222, %s223
    %p235 = scmp.eq.s32.totalorder %s24, 1
    %p236 = por %p234, %p235
    %p238 = scmp.ne.s32.totalorder %s223, %s237
    %p239 = scmp.eq.s32.totalorder %s24, 0
    %p240 = por %p238, %p239
    %s242 = sadd.s32 %s241, 1
    %p245 = scmp.eq.s32.totalorder %s18, 1
    %p246 = scmp.ne.s32.totalorder %s241, %s243
    %p247 = scmp.eq.s32.totalorder %s18, 0
    %p248 = por %p246, %p247
    %p249 = scmp.ne.s32.totalorder %s241, %s243
    %p250 = scmp.eq.s32.totalorder %s23, 1
    %p251 = por %p249, %p250
    %p252 = scmp.ne.s32.totalorder %s243, %s244
    %p253 = scmp.eq.s32.totalorder %s23, 0
    %p254 = por %p252, %p253
    %p255 = scmp.ne.s32.totalorder %s243, %s244
    %p256 = scmp.eq.s32.totalorder %s24, 1
    %p257 = por %p255, %p256
    %p259 = scmp.ne.s32.totalorder %s244, %s258
    %p260 = scmp.eq.s32.totalorder %s24, 0
    %p261 = por %p259, %p260
    %s263 = sadd.s32 %s262, 1
    %p266 = scmp.eq.s32.totalorder %s18, 1
    %p267 = scmp.ne.s32.totalorder %s262, %s264
    %p268 = scmp.eq.s32.totalorder %s18, 0
    %p269 = por %p267, %p268
    %p270 = scmp.ne.s32.totalorder %s262, %s264
    %p271 = scmp.eq.s32.totalorder %s23, 1
    %p272 = por %p270, %p271
    %p273 = scmp.ne.s32.totalorder %s264, %s265
    %p274 = scmp.eq.s32.totalorder %s23, 0
    %p275 = por %p273, %p274
    %p276 = scmp.ne.s32.totalorder %s264, %s265
    %p277 = scmp.eq.s32.totalorder %s24, 1
    %p278 = por %p276, %p277
    %p280 = scmp.ne.s32.totalorder %s265, %s279
    %p281 = scmp.eq.s32.totalorder %s24, 0
    %p282 = por %p280, %p281
    %s283 = ssub.s32 %s18, %s25
    %p284 = scmp.eq.s32.totalorder %s283, 0
    %s286 = sadd.s32 %s285, 1
    %s287 = scalar_select %p284, %s285, %s286
    %p290 = pneg %p284
    %p291 = scmp.eq.s32.totalorder %s18, 1
    %p292 = por %p290, %p291
    %p293 = scmp.ne.s32.totalorder %s285, %s288
    %p294 = scmp.eq.s32.totalorder %s18, 0
    %p295 = por %p293, %p294
    %p296 = scmp.ne.s32.totalorder %s285, %s288
    %p297 = scmp.eq.s32.totalorder %s23, 1
    %p298 = por %p296, %p297
    %p299 = scmp.ne.s32.totalorder %s288, %s289
    %p300 = scmp.eq.s32.totalorder %s23, 0
    %p301 = por %p299, %p300
    %p302 = scmp.ne.s32.totalorder %s288, %s289
    %p303 = scmp.eq.s32.totalorder %s24, 1
    %p304 = por %p302, %p303
    %p306 = scmp.ne.s32.totalorder %s289, %s305
    %p307 = scmp.eq.s32.totalorder %s24, 0
    %p308 = por %p306, %p307
    %p309 = scmp.le.s32.totalorder 1, %s18
    %p310 = scmp.lt.s32.totalorder %s18, 3
    %p311 = pnand %p309, %p310
    %p312 = pneg %p311
    // Predicated region
    $region9: #{stepwise_patch_merging.1} parent=5 // pred_check
      _
    $region10: #{stepwise_patch_merging.1} parent=5 // pred_check_branch
      %314 = sbr.rel (%p311) target = $region12
    $region11: #{stepwise_patch_merging.1} parent=5 // pred_region
      %s315 = ssub.s32 %s18, 1
      // Predicated region
      $region13: #{stepwise_patch_merging.1} parent=11 // pred_check
        %p316 = pneg %p65
      $region14: #{stepwise_patch_merging.1} parent=11 // pred_check_branch
        %318 = sbr.rel (%p316) target = $region16
      $region15: #{stepwise_patch_merging.1} parent=11 // pred_region
        _
      $region16: #{stepwise_patch_merging.1} parent=11 // pred_fallthru
        _
      // Predicated region
      $region17: #{stepwise_patch_merging.1} parent=11 // pred_check
        %p319 = pneg %p86
      $region18: #{stepwise_patch_merging.1} parent=11 // pred_check_branch
        %321 = sbr.rel (%p319) target = $region20
      $region19: #{stepwise_patch_merging.1} parent=11 // pred_region
        _
      $region20: #{stepwise_patch_merging.1} parent=11 // pred_fallthru
        _
      // Predicated region
      $region21: #{stepwise_patch_merging.1} parent=11 // pred_check
        %p322 = pneg %p107
      $region22: #{stepwise_patch_merging.1} parent=11 // pred_check_branch
        %324 = sbr.rel (%p322) target = $region24
      $region23: #{stepwise_patch_merging.1} parent=11 // pred_region
        _
      $region24: #{stepwise_patch_merging.1} parent=11 // pred_fallthru
        _
      // Predicated region
      $region25: #{stepwise_patch_merging.1} parent=11 // pred_check
        %p325 = pneg %p128
      $region26: #{stepwise_patch_merging.1} parent=11 // pred_check_branch
        %327 = sbr.rel (%p325) target = $region28
      $region27: #{stepwise_patch_merging.1} parent=11 // pred_region
        _
      $region28: #{stepwise_patch_merging.1} parent=11 // pred_fallthru
        _
      // Predicated region
      $region29: #{stepwise_patch_merging.1} parent=11 // pred_check
        %p328 = pneg %p149
      $region30: #{stepwise_patch_merging.1} parent=11 // pred_check_branch
        %330 = sbr.rel (%p328) target = $region32
      $region31: #{stepwise_patch_merging.1} parent=11 // pred_region
        _
      $region32: #{stepwise_patch_merging.1} parent=11 // pred_fallthru
        _
      // Predicated region
      $region33: #{stepwise_patch_merging.1} parent=11 // pred_check
        %p331 = pneg %p170
      $region34: #{stepwise_patch_merging.1} parent=11 // pred_check_branch
        %333 = sbr.rel (%p331) target = $region36
      $region35: #{stepwise_patch_merging.1} parent=11 // pred_region
        _
      $region36: #{stepwise_patch_merging.1} parent=11 // pred_fallthru
        _
      // Predicated region
      $region37: #{stepwise_patch_merging.1} parent=11 // pred_check
        %p334 = pneg %p191
      $region38: #{stepwise_patch_merging.1} parent=11 // pred_check_branch
        %336 = sbr.rel (%p334) target = $region40
      $region39: #{stepwise_patch_merging.1} parent=11 // pred_region
        _
      $region40: #{stepwise_patch_merging.1} parent=11 // pred_fallthru
        _
      // Predicated region
      $region41: #{stepwise_patch_merging.1} parent=11 // pred_check
        %p337 = pneg %p212
      $region42: #{stepwise_patch_merging.1} parent=11 // pred_check_branch
        %339 = sbr.rel (%p337) target = $region44
      $region43: #{stepwise_patch_merging.1} parent=11 // pred_region
        _
      $region44: #{stepwise_patch_merging.1} parent=11 // pred_fallthru
        _
      // Predicated region
      $region45: #{stepwise_patch_merging.1} parent=11 // pred_check
        %p340 = pneg %p233
      $region46: #{stepwise_patch_merging.1} parent=11 // pred_check_branch
        %342 = sbr.rel (%p340) target = $region48
      $region47: #{stepwise_patch_merging.1} parent=11 // pred_region
        _
      $region48: #{stepwise_patch_merging.1} parent=11 // pred_fallthru
        _
      // Predicated region
      $region49: #{stepwise_patch_merging.1} parent=11 // pred_check
        %p343 = pneg %p254
      $region50: #{stepwise_patch_merging.1} parent=11 // pred_check_branch
        %345 = sbr.rel (%p343) target = $region52
      $region51: #{stepwise_patch_merging.1} parent=11 // pred_region
        _
      $region52: #{stepwise_patch_merging.1} parent=11 // pred_fallthru
        _
      // Predicated region
      $region53: #{stepwise_patch_merging.1} parent=11 // pred_check
        %p346 = pneg %p275
      $region54: #{stepwise_patch_merging.1} parent=11 // pred_check_branch
        %348 = sbr.rel (%p346) target = $region56
      $region55: #{stepwise_patch_merging.1} parent=11 // pred_region
        _
      $region56: #{stepwise_patch_merging.1} parent=11 // pred_fallthru
        _
    $region12: #{stepwise_patch_merging.1} parent=5 // pred_fallthru
      _
    %p349 = scmp.lt.s32.totalorder %s18, 2
    // Predicated region
    $region57: #{stepwise_patch_merging.1} parent=5 // pred_check
      %p350 = pneg %p349
    $region58: #{stepwise_patch_merging.1} parent=5 // pred_check_branch
      %352 = sbr.rel (%p350) target = $region60
    $region59: #{stepwise_patch_merging.1} parent=5 // pred_region
      // Predicated region
      $region61: #{stepwise_patch_merging.1} parent=59 // pred_check
        %p353 = pneg %p38
      $region62: #{stepwise_patch_merging.1} parent=59 // pred_check_branch
        %355 = sbr.rel (%p353) target = $region64
      $region63: #{stepwise_patch_merging.1} parent=59 // pred_region
        %p356 = scmp.lt.s32.totalorder %s18, 1
        %s357 = scalar_select %p356, %s18, 1
        %s358 = smul.addr %s357, 2
        %s359 = smul.addr %s358, 8
        %s360 = scalar_lea.vmem %s0, %s359
      $region64: #{stepwise_patch_merging.1} parent=59 // pred_fallthru
        _
    $region60: #{stepwise_patch_merging.1} parent=5 // pred_fallthru
      _
    %p361 = scmp.le.s32.totalorder 1, %s18
    %p362 = scmp.lt.s32.totalorder %s18, 3
    %p363 = pnand %p361, %p362
    %p364 = pneg %p363
    // Predicated region
    $region65: #{stepwise_patch_merging.1} parent=5 // pred_check
      _
    $region66: #{stepwise_patch_merging.1} parent=5 // pred_check_branch
      %366 = sbr.rel (%p363) target = $region68
    $region67: #{stepwise_patch_merging.1} parent=5 // pred_region
      %s367 = ssub.s32 %s18, 1
      %p368 = scmp.lt.s32.totalorder %s23, 1
      %s369 = scalar_select %p368, %s23, 1
      %s370 = smul.addr %s369, 2
      %s371 = smul.addr %s370, 8
      %s372 = scalar_lea.vmem %s0, %s371
      %p373 = pneg %p44
      %p374 = pneg %p41
      %p375 = pneg %p65
      %p376 = pneg %p62
      %p377 = pneg %p86
      %p378 = pneg %p83
      %p379 = pneg %p107
      %p380 = pneg %p104
      %p381 = pneg %p128
      %p382 = pneg %p125
      %p383 = pneg %p149
      %p384 = pneg %p146
      %p385 = pneg %p170
      %p386 = pneg %p167
      %p387 = pneg %p191
      %p388 = pneg %p188
      %p389 = pneg %p212
      %p390 = pneg %p209
      %p391 = pneg %p233
      %p392 = pneg %p230
      %p393 = pneg %p254
      %p394 = pneg %p251
      %p395 = pneg %p275
      %p396 = pneg %p272
      %p397 = pneg %p301
      %p398 = pneg %p298
      %p399 = scmp.lt.s32.totalorder %s23, 1
      %s400 = scalar_select %p399, %s23, 1
      %s401 = smul.addr %s400, 8
      %s402 = scalar_lea.vmem %s12, %s401
      %p403 = scmp.lt.s32.totalorder %s23, 1
      %s404 = scalar_select %p403, %s23, 1
      %s405 = smul.addr %s404, 2
      %s406 = smul.addr %s405, 8
      %s407 = scalar_lea.vmem %s0, %s406
      %p408 = scmp.lt.s32.totalorder %s23, 1
      %s409 = scalar_select %p408, %s23, 1
      %s410 = smul.addr %s409, 8
      %s411 = scalar_lea.vmem %s12, %s410
      %v412 = vld [vmem:[%s407] sm:$0x1]
      %v413 = vld [vmem:[%s1] sm:$0xff]
      %v414 = vld [vmem:[%s1 + $0x8] sm:$0xff]
      %v415 = vlaneseq
      %v416 = vshrl.u32 %v415, 7
      %v417 = vsub.s32 0, %v416
      %v418 = vrot.slane %v412, %v417
      %v419 = vmul.f32 %v418, %v413
      %v420 = vmul.f32 %v418, %v414
      %v421 = vld [vmem:[%s407 + $0x1] sm:$0x1]
      %s422 = scalar_lea.vmem %s1, 16
      %v423 = vld [vmem:[%s422] sm:$0xff]
      %v424 = vld [vmem:[%s422 + $0x8] sm:$0xff]
      %v425 = vlaneseq
      %v426 = vshrl.u32 %v425, 7
      %v427 = vsub.s32 0, %v426
      %v428 = vrot.slane %v421, %v427
      %v429 = vmul.f32 %v428, %v423
      %v430 = vmul.f32 %v428, %v424
      %v431 = vadd.f32 %v419, %v429
      %v432 = vadd.f32 %v420, %v430
      %v433 = vld [vmem:[%s407 + $0x2] sm:$0x1]
      %s434 = scalar_lea.vmem %s1, 32
      %v435 = vld [vmem:[%s434] sm:$0xff]
      %v436 = vld [vmem:[%s434 + $0x8] sm:$0xff]
      %v437 = vlaneseq
      %v438 = vshrl.u32 %v437, 7
      %v439 = vsub.s32 0, %v438
      %v440 = vrot.slane %v433, %v439
      %v441 = vmul.f32 %v440, %v435
      %v442 = vmul.f32 %v440, %v436
      %v443 = vadd.f32 %v431, %v441
      %v444 = vadd.f32 %v432, %v442
      %v445 = vld [vmem:[%s407 + $0x3] sm:$0x1]
      %s446 = scalar_lea.vmem %s1, 48
      %v447 = vld [vmem:[%s446] sm:$0xff]
      %v448 = vld [vmem:[%s446 + $0x8] sm:$0xff]
      %v449 = vlaneseq
      %v450 = vshrl.u32 %v449, 7
      %v451 = vsub.s32 0, %v450
      %v452 = vrot.slane %v445, %v451
      %v453 = vmul.f32 %v452, %v447
      %v454 = vmul.f32 %v452, %v448
      %v455 = vadd.f32 %v443, %v453
      %v456 = vadd.f32 %v444, %v454
      %v457 = vld [vmem:[%s407 + $0x4] sm:$0x1]
      %s458 = scalar_lea.vmem %s1, 64
      %v459 = vld [vmem:[%s458] sm:$0xff]
      %v460 = vld [vmem:[%s458 + $0x8] sm:$0xff]
      %v461 = vlaneseq
      %v462 = vshrl.u32 %v461, 7
      %v463 = vsub.s32 0, %v462
      %v464 = vrot.slane %v457, %v463
      %v465 = vmul.f32 %v464, %v459
      %v466 = vmul.f32 %v464, %v460
      %v467 = vadd.f32 %v455, %v465
      %v468 = vadd.f32 %v456, %v466
      %v469 = vld [vmem:[%s407 + $0x5] sm:$0x1]
      %s470 = scalar_lea.vmem %s1, 80
      %v471 = vld [vmem:[%s470] sm:$0xff]
      %v472 = vld [vmem:[%s470 + $0x8] sm:$0xff]
      %v473 = vlaneseq
      %v474 = vshrl.u32 %v473, 7
      %v475 = vsub.s32 0, %v474
      %v476 = vrot.slane %v469, %v475
      %v477 = vmul.f32 %v476, %v471
      %v478 = vmul.f32 %v476, %v472
      %v479 = vadd.f32 %v467, %v477
      %v480 = vadd.f32 %v468, %v478
      %v481 = vld [vmem:[%s407 + $0x6] sm:$0x1]
      %s482 = scalar_lea.vmem %s1, 96
      %v483 = vld [vmem:[%s482] sm:$0xff]
      %v484 = vld [vmem:[%s482 + $0x8] sm:$0xff]
      %v485 = vlaneseq
      %v486 = vshrl.u32 %v485, 7
      %v487 = vsub.s32 0, %v486
      %v488 = vrot.slane %v481, %v487
      %v489 = vmul.f32 %v488, %v483
      %v490 = vmul.f32 %v488, %v484
      %v491 = vadd.f32 %v479, %v489
      %v492 = vadd.f32 %v480, %v490
      %v493 = vld [vmem:[%s407 + $0x7] sm:$0x1]
      %s494 = scalar_lea.vmem %s1, 112
      %v495 = vld [vmem:[%s494] sm:$0xff]
      %v496 = vld [vmem:[%s494 + $0x8] sm:$0xff]
      %v497 = vlaneseq
      %v498 = vshrl.u32 %v497, 7
      %v499 = vsub.s32 0, %v498
      %v500 = vrot.slane %v493, %v499
      %v501 = vmul.f32 %v500, %v495
      %v502 = vmul.f32 %v500, %v496
      %v503 = vadd.f32 %v491, %v501
      %v504 = vadd.f32 %v492, %v502
      %v505 = vld [vmem:[%s407 + $0x8] sm:$0x1]
      %s506 = scalar_lea.vmem %s1, 128
      %v507 = vld [vmem:[%s506] sm:$0xff]
      %v508 = vld [vmem:[%s506 + $0x8] sm:$0xff]
      %v509 = vlaneseq
      %v510 = vshrl.u32 %v509, 7
      %v511 = vsub.s32 0, %v510
      %v512 = vrot.slane %v505, %v511
      %v513 = vmul.f32 %v512, %v507
      %v514 = vmul.f32 %v512, %v508
      %v515 = vadd.f32 %v503, %v513
      %v516 = vadd.f32 %v504, %v514
      %v517 = vld [vmem:[%s407 + $0x9] sm:$0x1]
      %s518 = scalar_lea.vmem %s1, 144
      %v519 = vld [vmem:[%s518] sm:$0xff]
      %v520 = vld [vmem:[%s518 + $0x8] sm:$0xff]
      %v521 = vlaneseq
      %v522 = vshrl.u32 %v521, 7
      %v523 = vsub.s32 0, %v522
      %v524 = vrot.slane %v517, %v523
      %v525 = vmul.f32 %v524, %v519
      %v526 = vmul.f32 %v524, %v520
      %v527 = vadd.f32 %v515, %v525
      %v528 = vadd.f32 %v516, %v526
      %v529 = vld [vmem:[%s407 + $0xa] sm:$0x1]
      %s530 = scalar_lea.vmem %s1, 160
      %v531 = vld [vmem:[%s530] sm:$0xff]
      %v532 = vld [vmem:[%s530 + $0x8] sm:$0xff]
      %v533 = vlaneseq
      %v534 = vshrl.u32 %v533, 7
      %v535 = vsub.s32 0, %v534
      %v536 = vrot.slane %v529, %v535
      %v537 = vmul.f32 %v536, %v531
      %v538 = vmul.f32 %v536, %v532
      %v539 = vadd.f32 %v527, %v537
      %v540 = vadd.f32 %v528, %v538
      %v541 = vld [vmem:[%s407 + $0xb] sm:$0x1]
      %s542 = scalar_lea.vmem %s1, 176
      %v543 = vld [vmem:[%s542] sm:$0xff]
      %v544 = vld [vmem:[%s542 + $0x8] sm:$0xff]
      %v545 = vlaneseq
      %v546 = vshrl.u32 %v545, 7
      %v547 = vsub.s32 0, %v546
      %v548 = vrot.slane %v541, %v547
      %v549 = vmul.f32 %v548, %v543
      %v550 = vmul.f32 %v548, %v544
      %v551 = vadd.f32 %v539, %v549
      %v552 = vadd.f32 %v540, %v550
      %v553 = vld [vmem:[%s407 + $0xc] sm:$0x1]
      %s554 = scalar_lea.vmem %s1, 192
      %v555 = vld [vmem:[%s554] sm:$0xff]
      %v556 = vld [vmem:[%s554 + $0x8] sm:$0xff]
      %v557 = vlaneseq
      %v558 = vshrl.u32 %v557, 7
      %v559 = vsub.s32 0, %v558
      %v560 = vrot.slane %v553, %v559
      %v561 = vmul.f32 %v560, %v555
      %v562 = vmul.f32 %v560, %v556
      %v563 = vadd.f32 %v551, %v561
      %v564 = vadd.f32 %v552, %v562
      %v565 = vld [vmem:[%s407 + $0xd] sm:$0x1]
      %s566 = scalar_lea.vmem %s1, 208
      %v567 = vld [vmem:[%s566] sm:$0xff]
      %v568 = vld [vmem:[%s566 + $0x8] sm:$0xff]
      %v569 = vlaneseq
      %v570 = vshrl.u32 %v569, 7
      %v571 = vsub.s32 0, %v570
      %v572 = vrot.slane %v565, %v571
      %v573 = vmul.f32 %v572, %v567
      %v574 = vmul.f32 %v572, %v568
      %v575 = vadd.f32 %v563, %v573
      %v576 = vadd.f32 %v564, %v574
      %v577 = vld [vmem:[%s407 + $0xe] sm:$0x1]
      %s578 = scalar_lea.vmem %s1, 224
      %v579 = vld [vmem:[%s578] sm:$0xff]
      %v580 = vld [vmem:[%s578 + $0x8] sm:$0xff]
      %v581 = vlaneseq
      %v582 = vshrl.u32 %v581, 7
      %v583 = vsub.s32 0, %v582
      %v584 = vrot.slane %v577, %v583
      %v585 = vmul.f32 %v584, %v579
      %v586 = vmul.f32 %v584, %v580
      %v587 = vadd.f32 %v575, %v585
      %v588 = vadd.f32 %v576, %v586
      %v589 = vld [vmem:[%s407 + $0xf] sm:$0x1]
      %s590 = scalar_lea.vmem %s1, 240
      %v591 = vld [vmem:[%s590] sm:$0xff]
      %v592 = vld [vmem:[%s590 + $0x8] sm:$0xff]
      %v593 = vlaneseq
      %v594 = vshrl.u32 %v593, 7
      %v595 = vsub.s32 0, %v594
      %v596 = vrot.slane %v589, %v595
      %v597 = vmul.f32 %v596, %v591
      %v598 = vmul.f32 %v596, %v592
      %v599 = vadd.f32 %v587, %v597
      %v600 = vadd.f32 %v588, %v598
      %v601 = vld [vmem:[%s2] sm:$0xff]
      %v602 = vld [vmem:[%s2 + $0x8] sm:$0xff]
      %v603 = vld [vmem:[%s3] sm:$0x1]
      %v605 = vlaneseq
      %v606 = vshrl.u32 %v605, 7
      %v607 = vsub.s32 0, %v606
      %v608 = vrot.slane %v603, %v607
      %vm610 = vcmask 130048
      %v612 = vsel %vm610, %v599, 0
      %v615 = vsel %vm610, %v600, 0
      %617 = vmatprep.subr.mxu0 0.0
      %618 = vmatpush1.msra.mxu0 %v601
      %619 = vmatprep.subr.mxu0 0.0
      %620 = vmatpush1.msra.mxu0 %v602
      %621 = vmatprep.subr.mxu0 0.0
      %622 = vmatpush1.msra.mxu0 0.0
      %623 = vmatprep.subr.mxu0 0.0
      %624 = vmatpush1.msra.mxu0 0.0
      %625 = vmatprep.subr.mxu0 0.0
      %626 = vmatpush1.msra.mxu0 0.0
      %627 = vmatprep.subr.mxu0 0.0
      %628 = vmatpush1.msra.mxu0 0.0
      %629 = vmatprep.subr.mxu0 0.0
      %630 = vmatpush1.msra.mxu0 0.0
      %631 = vmatprep.subr.mxu0 0.0
      %632 = vmatpush1.msra.mxu0 0.0
      %633 = vmatprep.subr.mxu0 0.0
      %634 = vmatpush1.msra.mxu0 0.0
      %635 = vmatprep.subr.mxu0 0.0
      %636 = vmatpush1.msra.mxu0 0.0
      %637 = vmatprep.subr.mxu0 0.0
      %638 = vmatpush1.msra.mxu0 0.0
      %639 = vmatprep.subr.mxu0 0.0
      %640 = vmatpush1.msra.mxu0 0.0
      %641 = vmatprep.subr.mxu0 0.0
      %642 = vmatpush1.msra.mxu0 0.0
      %643 = vmatprep.subr.mxu0 0.0
      %644 = vmatpush1.msra.mxu0 0.0
      %645 = vmatprep.subr.mxu0 0.0
      %646 = vmatpush1.msra.mxu0 0.0
      %647 = vmatprep.subr.mxu0 0.0
      %648 = vmatpush1.msra.mxu0 0.0
      %649 = vmatprep.subr.mxu0 0.0
      %650 = vmatpush1.msra.mxu0 0.0
      %651 = vmatprep.subr.mxu0 0.0
      %652 = vmatpush1.msra.mxu0 0.0
      %653 = vmatprep.subr.mxu0 0.0
      %654 = vmatpush1.msra.mxu0 0.0
      %655 = vmatprep.subr.mxu0 0.0
      %656 = vmatpush1.msra.mxu0 0.0
      %657 = vmatprep.subr.mxu0 0.0
      %658 = vmatpush1.msra.mxu0 0.0
      %659 = vmatprep.subr.mxu0 0.0
      %660 = vmatpush1.msra.mxu0 0.0
      %661 = vmatprep.subr.mxu0 0.0
      %662 = vmatpush1.msra.mxu0 0.0
      %663 = vmatprep.subr.mxu0 0.0
      %664 = vmatpush1.msra.mxu0 0.0
      %665 = vmatprep.subr.mxu0 0.0
      %666 = vmatpush1.msra.mxu0 0.0
      %667 = vmatprep.subr.mxu0 0.0
      %668 = vmatpush1.msra.mxu0 0.0
      %669 = vmatprep.subr.mxu0 0.0
      %670 = vmatpush1.msra.mxu0 0.0
      %671 = vmatprep.subr.mxu0 0.0
      %672 = vmatpush1.msra.mxu0 0.0
      %673 = vmatprep.subr.mxu0 0.0
      %674 = vmatpush1.msra.mxu0 0.0
      %675 = vmatprep.subr.mxu0 0.0
      %676 = vmatpush1.msra.mxu0 0.0
      %677 = vmatprep.subr.mxu0 0.0
      %678 = vmatpush1.msra.mxu0 0.0
      %679 = vmatprep.subr.mxu0 0.0
      %680 = vmatpush1.msra.mxu0 0.0
      %681 = vmatprep.mubr.f32.mxu0 0.0
      %682 = vmatmul.mubr.f32.gmra.mrb[0].mxu0 %v612
      %v683 = vpop.f32.mrb[0].mxu0
      %v684 = vadd.f32 %v608, %v683
      %v685 = vpop.f32.mrb[0].mxu0
      %686 = vmatprep.mubr.f32.mxu0 0.0
      %687 = vmatmul.mubr.f32.gmra.mrb[0].mxu0 %v615
      %v688 = vpop.f32.mrb[0].mxu0
      %v689 = vadd.f32 %v608, %v688
      %v690 = vpop.f32.mrb[0].mxu0
      %691 = vdwg.mxu0
      %v692 = vld [vmem:[%s4] sm:$0x1]
      %v694 = vlaneseq
      %v695 = vshrl.u32 %v694, 7
      %v696 = vsub.s32 0, %v695
      %v697 = vrot.slane %v692, %v696
      %v699 = vmul.f32 %v684, %v697
      %v700 = vmul.f32 %v689, %v697
      %v701 = vld [vmem:[%s5] sm:$0x1]
      %v703 = vlaneseq
      %v704 = vshrl.u32 %v703, 7
      %v705 = vsub.s32 0, %v704
      %v706 = vrot.slane %v701, %v705
      %v708 = vadd.f32 %v699, %v706
      %v709 = vadd.f32 %v700, %v706
      %v710 = vmul.f32 %v708, 0.5
      %v711 = vmul.f32 %v709, 0.5
      %v712 = vmul.f32 %v708, 0.70710677
      %v713 = vmul.f32 %v709, 0.70710677
      %v714 = vand.u32 2147483647, %v712
      %v715 = vand.u32 2147483647, %v713
      %v716 = vmul.f32 %v714, 0.3275911
      %v717 = vmul.f32 %v715, 0.3275911
      %v718 = vadd.f32 %v716, 1.0
      %v719 = vadd.f32 %v717, 1.0
      %v720 = vrcp.pop %v718
      %v721 = vmul.f32 1.0, %v720
      %v722 = vrcp.pop %v719
      %v723 = vmul.f32 1.0, %v722
      %v724 = vmul.f32 %v721, 1.0614054
      %v725 = vmul.f32 %v723, 1.0614054
      %v726 = vadd.f32 %v724, -1.4531521
      %v727 = vadd.f32 %v725, -1.4531521
      %v728 = vmul.f32 %v726, %v721
      %v729 = vmul.f32 %v727, %v723
      %v730 = vadd.f32 %v728, 1.4214138
      %v731 = vadd.f32 %v729, 1.4214138
      %v732 = vmul.f32 %v730, %v721
      %v733 = vmul.f32 %v731, %v723
      %v734 = vadd.f32 %v732, -0.28449672
      %v735 = vadd.f32 %v733, -0.28449672
      %v736 = vmul.f32 %v734, %v721
      %v737 = vmul.f32 %v735, %v723
      %v738 = vadd.f32 %v736, 0.2548296
      %v739 = vadd.f32 %v737, 0.2548296
      %v740 = vmul.f32 %v738, %v721
      %v741 = vmul.f32 %v739, %v723
      %v742 = vmul.f32 %v712, %v712
      %v743 = vmul.f32 %v713, %v713
      %v744 = vsub.f32 0.0, %v742
      %v745 = vsub.f32 0.0, %v743
      %v746 = vmul.f32 %v744, 1.442695
      %v747 = vpow.pop %v746
      %v748 = vmul.f32 %v745, 1.442695
      %v749 = vpow.pop %v748
      %v750 = vmul.f32 %v740, %v747
      %v751 = vmul.f32 %v741, %v749
      %v752 = vsub.f32 1.0, %v750
      %v753 = vsub.f32 1.0, %v751
      %vm754 = vcmp.ge.f32.partialorder %v712, 0.0
      %vm755 = vcmp.ge.f32.partialorder %v713, 0.0
      %v756 = vsub.f32 0.0, %v752
      %v757 = vsub.f32 0.0, %v753
      %v758 = vsel %vm754, %v752, %v756
      %v759 = vsel %vm755, %v753, %v757
      %v760 = vadd.f32 %v758, 1.0
      %v761 = vadd.f32 %v759, 1.0
      %v762 = vmul.f32 %v710, %v760
      %v763 = vmul.f32 %v711, %v761
      %v764 = vld [vmem:[%s6] sm:$0xf]
      %v765 = vlaneseq
      %v766 = vshrl.u32 %v765, 7
      %v767 = vsub.s32 0, %v766
      %v768 = vrot.slane %v762, %v767
      %v769 = vmul.f32 %v768, %v764
      %s770 = scalar_lea.vmem %s6, 4
      %v771 = vld [vmem:[%s770] sm:$0xf]
      %v772 = vlaneseq
      %v773 = vshrl.u32 %v772, 7
      %v774 = vsub.s32 1, %v773
      %v775 = vrot.slane %v762, %v774
      %v776 = vmul.f32 %v775, %v771
      %v777 = vadd.f32 %v769, %v776
      %s778 = scalar_lea.vmem %s6, 8
      %v779 = vld [vmem:[%s778] sm:$0xf]
      %v780 = vlaneseq
      %v781 = vshrl.u32 %v780, 7
      %v782 = vsub.s32 2, %v781
      %v783 = vrot.slane %v762, %v782
      %v784 = vmul.f32 %v783, %v779
      %v785 = vadd.f32 %v777, %v784
      %s786 = scalar_lea.vmem %s6, 12
      %v787 = vld [vmem:[%s786] sm:$0xf]
      %v788 = vlaneseq
      %v789 = vshrl.u32 %v788, 7
      %v790 = vsub.s32 3, %v789
      %v791 = vrot.slane %v762, %v790
      %v792 = vmul.f32 %v791, %v787
      %v793 = vadd.f32 %v785, %v792
      %s794 = scalar_lea.vmem %s6, 16
      %v795 = vld [vmem:[%s794] sm:$0xf]
      %v796 = vlaneseq
      %v797 = vshrl.u32 %v796, 7
      %v798 = vsub.s32 4, %v797
      %v799 = vrot.slane %v762, %v798
      %v800 = vmul.f32 %v799, %v795
      %v801 = vadd.f32 %v793, %v800
      %s802 = scalar_lea.vmem %s6, 20
      %v803 = vld [vmem:[%s802] sm:$0xf]
      %v804 = vlaneseq
      %v805 = vshrl.u32 %v804, 7
      %v806 = vsub.s32 5, %v805
      %v807 = vrot.slane %v762, %v806
      %v808 = vmul.f32 %v807, %v803
      %v809 = vadd.f32 %v801, %v808
      %s810 = scalar_lea.vmem %s6, 24
      %v811 = vld [vmem:[%s810] sm:$0xf]
      %v812 = vlaneseq
      %v813 = vshrl.u32 %v812, 7
      %v814 = vsub.s32 6, %v813
      %v815 = vrot.slane %v762, %v814
      %v816 = vmul.f32 %v815, %v811
      %v817 = vadd.f32 %v809, %v816
      %s818 = scalar_lea.vmem %s6, 28
      %v819 = vld [vmem:[%s818] sm:$0xf]
      %v820 = vlaneseq
      %v821 = vshrl.u32 %v820, 7
      %v822 = vsub.s32 7, %v821
      %v823 = vrot.slane %v762, %v822
      %v824 = vmul.f32 %v823, %v819
      %v825 = vadd.f32 %v817, %v824
      %s826 = scalar_lea.vmem %s6, 32
      %v827 = vld [vmem:[%s826] sm:$0xf]
      %v828 = vlaneseq
      %v829 = vshrl.u32 %v828, 7
      %v830 = vsub.s32 0, %v829
      %v831 = vrot.slane %v763, %v830
      %v832 = vmul.f32 %v831, %v827
      %v833 = vadd.f32 %v825, %v832
      %s834 = scalar_lea.vmem %s6, 36
      %v835 = vld [vmem:[%s834] sm:$0xf]
      %v836 = vlaneseq
      %v837 = vshrl.u32 %v836, 7
      %v838 = vsub.s32 1, %v837
      %v839 = vrot.slane %v763, %v838
      %v840 = vmul.f32 %v839, %v835
      %v841 = vadd.f32 %v833, %v840
      %s842 = scalar_lea.vmem %s6, 40
      %v843 = vld [vmem:[%s842] sm:$0xf]
      %v844 = vlaneseq
      %v845 = vshrl.u32 %v844, 7
      %v846 = vsub.s32 2, %v845
      %v847 = vrot.slane %v763, %v846
      %v848 = vmul.f32 %v847, %v843
      %v849 = vadd.f32 %v841, %v848
      %s850 = scalar_lea.vmem %s6, 44
      %v851 = vld [vmem:[%s850] sm:$0xf]
      %v852 = vlaneseq
      %v853 = vshrl.u32 %v852, 7
      %v854 = vsub.s32 3, %v853
      %v855 = vrot.slane %v763, %v854
      %v856 = vmul.f32 %v855, %v851
      %v857 = vadd.f32 %v849, %v856
      %s858 = scalar_lea.vmem %s6, 48
      %v859 = vld [vmem:[%s858] sm:$0xf]
      %v860 = vlaneseq
      %v861 = vshrl.u32 %v860, 7
      %v862 = vsub.s32 4, %v861
      %v863 = vrot.slane %v763, %v862
      %v864 = vmul.f32 %v863, %v859
      %v865 = vadd.f32 %v857, %v864
      %s866 = scalar_lea.vmem %s6, 52
      %v867 = vld [vmem:[%s866] sm:$0xf]
      %v868 = vlaneseq
      %v869 = vshrl.u32 %v868, 7
      %v870 = vsub.s32 5, %v869
      %v871 = vrot.slane %v763, %v870
      %v872 = vmul.f32 %v871, %v867
      %v873 = vadd.f32 %v865, %v872
      %s874 = scalar_lea.vmem %s6, 56
      %v875 = vld [vmem:[%s874] sm:$0xf]
      %v876 = vlaneseq
      %v877 = vshrl.u32 %v876, 7
      %v878 = vsub.s32 6, %v877
      %v879 = vrot.slane %v763, %v878
      %v880 = vmul.f32 %v879, %v875
      %v881 = vadd.f32 %v873, %v880
      %s882 = scalar_lea.vmem %s6, 60
      %v883 = vld [vmem:[%s882] sm:$0xf]
      %v884 = vlaneseq
      %v885 = vshrl.u32 %v884, 7
      %v886 = vsub.s32 7, %v885
      %v887 = vrot.slane %v763, %v886
      %v888 = vmul.f32 %v887, %v883
      %v889 = vadd.f32 %v881, %v888
      %v890 = vld [vmem:[%s7] sm:$0x1]
      %v892 = vlaneseq
      %v893 = vshrl.u32 %v892, 7
      %v894 = vsub.s32 0, %v893
      %v895 = vrot.slane %v890, %v894
      %v897 = vadd.f32 %v889, %v895
      %v898 = vld [vmem:[%s8] sm:$0x1]
      %v899 = vld [vmem:[%s8 + $0x1] sm:$0x1]
      %v900 = vld [vmem:[%s8 + $0x2] sm:$0x1]
      %v901 = vlaneseq
      %v902 = vshrl.u32 %v901, 7
      %v903 = vsub.s32 0, %v902
      %v904 = vrot.slane %v898, %v903
      %v905 = vmul.f32 %v897, %v904
      %vm906 = vcmask 35840
      %v907 = vsel %vm906, %v905, 0.0
      %908 = vadd.xlane.f32.xlu0 %v907
      %v909 = vpop.xlane.xlu0 %908
      %v910 = vmul.f32 %v684, %v904
      %v911 = vsel %vm906, %v910, 0.0
      %912 = vadd.xlane.f32.xlu0 %v911
      %v913 = vpop.xlane.xlu0 %912
      %vm914 = vcmask 39940
      %v915 = vsel %vm914, %v910, 0.0
      %916 = vadd.xlane.f32.xlu0 %v915
      %v917 = vpop.xlane.xlu0 %916
      %v918 = vmul.f32 %v689, %v904
      %v919 = vsel %vm906, %v918, 0.0
      %920 = vadd.xlane.f32.xlu0 %v919
      %v921 = vpop.xlane.xlu0 %920
      %v922 = vsel %vm914, %v918, 0.0
      %923 = vadd.xlane.f32.xlu0 %v922
      %v924 = vpop.xlane.xlu0 %923
      %v926 = vlaneseq
      %v927 = vand.u32 %v926, 127
      %v928 = vlaneseq
      %v929 = vshrl.u32 %v928, 7
      %v930 = vsub.s32 %v927, %v929
      %v931 = vrot.slane %v909, %v930
      %v934 = vlaneseq
      %v935 = vshrl.u32 %v934, 7
      %v936 = vsub.s32 %v927, %v935
      %v937 = vrot.slane %v913, %v936
      %v940 = vadd.s32 %v927, 4
      %v941 = vlaneseq
      %v942 = vshrl.u32 %v941, 7
      %v943 = vsub.s32 %v940, %v942
      %v944 = vrot.slane %v917, %v943
      %v947 = vlaneseq
      %v948 = vshrl.u32 %v947, 7
      %v949 = vsub.s32 %v927, %v948
      %v950 = vrot.slane %v921, %v949
      %v953 = vlaneseq
      %v954 = vshrl.u32 %v953, 7
      %v955 = vsub.s32 %v940, %v954
      %v956 = vrot.slane %v924, %v955
      %vm958 = vcmask 1040384
      %v959 = vsel %vm958, %v931, %v937
      %vm960 = vcmask 1041408
      %v961 = vsel %vm960, %v959, %v944
      %vm962 = vcmask 1042432
      %v963 = vsel %vm962, %v961, %v950
      %vm964 = vcmask 1043456
      %v965 = vsel %vm964, %v963, %v956
      %v966 = vld [vmem:[%s9] sm:$0x1]
      %v968 = vlaneseq
      %v969 = vshrl.u32 %v968, 7
      %v970 = vsub.s32 0, %v969
      %v971 = vrot.slane %v966, %v970
      %972 = vset.pattern.permute.xlu0 0
      %973 = vperm.xlu0 %972, %v971
      %v974 = vpop.permute.xlu0 %973
      %v976 = vadd.f32 %v965, %v974
      %v977 = vlaneseq
      %v978 = vshrl.u32 %v977, 7
      %v979 = vsub.s32 0, %v978
      %v980 = vrot.slane %v899, %v979
      %v981 = vmul.f32 %v897, %v980
      %v982 = vsel %vm906, %v981, 0.0
      %983 = vadd.xlane.f32.xlu0 %v982
      %v984 = vpop.xlane.xlu0 %983
      %v985 = vmul.f32 %v684, %v980
      %v986 = vsel %vm906, %v985, 0.0
      %987 = vadd.xlane.f32.xlu0 %v986
      %v988 = vpop.xlane.xlu0 %987
      %v989 = vsel %vm914, %v985, 0.0
      %990 = vadd.xlane.f32.xlu0 %v989
      %v991 = vpop.xlane.xlu0 %990
      %v992 = vmul.f32 %v689, %v980
      %v993 = vsel %vm906, %v992, 0.0
      %994 = vadd.xlane.f32.xlu0 %v993
      %v995 = vpop.xlane.xlu0 %994
      %v996 = vsel %vm914, %v992, 0.0
      %997 = vadd.xlane.f32.xlu0 %v996
      %v998 = vpop.xlane.xlu0 %997
      %v1000 = vlaneseq
      %v1001 = vshrl.u32 %v1000, 7
      %v1002 = vsub.s32 %v927, %v1001
      %v1003 = vrot.slane %v984, %v1002
      %v1006 = vlaneseq
      %v1007 = vshrl.u32 %v1006, 7
      %v1008 = vsub.s32 %v927, %v1007
      %v1009 = vrot.slane %v988, %v1008
      %v1012 = vlaneseq
      %v1013 = vshrl.u32 %v1012, 7
      %v1014 = vsub.s32 %v940, %v1013
      %v1015 = vrot.slane %v991, %v1014
      %v1018 = vlaneseq
      %v1019 = vshrl.u32 %v1018, 7
      %v1020 = vsub.s32 %v927, %v1019
      %v1021 = vrot.slane %v995, %v1020
      %v1024 = vlaneseq
      %v1025 = vshrl.u32 %v1024, 7
      %v1026 = vsub.s32 %v940, %v1025
      %v1027 = vrot.slane %v998, %v1026
      %v1029 = vsel %vm958, %v1003, %v1009
      %v1030 = vsel %vm960, %v1029, %v1015
      %v1031 = vsel %vm962, %v1030, %v1021
      %v1032 = vsel %vm964, %v1031, %v1027
      %1033 = vset.pattern.permute.xlu0 1
      %1034 = vperm.xlu0 %1033, %v971
      %v1035 = vpop.permute.xlu0 %1034
      %v1037 = vadd.f32 %v1032, %v1035
      %v1038 = vlaneseq
      %v1039 = vshrl.u32 %v1038, 7
      %v1040 = vsub.s32 0, %v1039
      %v1041 = vrot.slane %v900, %v1040
      %v1042 = vmul.f32 %v897, %v1041
      %v1043 = vsel %vm906, %v1042, 0.0
      %1044 = vadd.xlane.f32.xlu0 %v1043
      %v1045 = vpop.xlane.xlu0 %1044
      %v1046 = vmul.f32 %v684, %v1041
      %v1047 = vsel %vm906, %v1046, 0.0
      %1048 = vadd.xlane.f32.xlu0 %v1047
      %v1049 = vpop.xlane.xlu0 %1048
      %v1050 = vsel %vm914, %v1046, 0.0
      %1051 = vadd.xlane.f32.xlu0 %v1050
      %v1052 = vpop.xlane.xlu0 %1051
      %v1053 = vmul.f32 %v689, %v1041
      %v1054 = vsel %vm906, %v1053, 0.0
      %1055 = vadd.xlane.f32.xlu0 %v1054
      %v1056 = vpop.xlane.xlu0 %1055
      %v1057 = vsel %vm914, %v1053, 0.0
      %1058 = vadd.xlane.f32.xlu0 %v1057
      %v1059 = vpop.xlane.xlu0 %1058
      %v1061 = vlaneseq
      %v1062 = vshrl.u32 %v1061, 7
      %v1063 = vsub.s32 %v927, %v1062
      %v1064 = vrot.slane %v1045, %v1063
      %v1067 = vlaneseq
      %v1068 = vshrl.u32 %v1067, 7
      %v1069 = vsub.s32 %v927, %v1068
      %v1070 = vrot.slane %v1049, %v1069
      %v1073 = vlaneseq
      %v1074 = vshrl.u32 %v1073, 7
      %v1075 = vsub.s32 %v940, %v1074
      %v1076 = vrot.slane %v1052, %v1075
      %v1079 = vlaneseq
      %v1080 = vshrl.u32 %v1079, 7
      %v1081 = vsub.s32 %v927, %v1080
      %v1082 = vrot.slane %v1056, %v1081
      %v1085 = vlaneseq
      %v1086 = vshrl.u32 %v1085, 7
      %v1087 = vsub.s32 %v940, %v1086
      %v1088 = vrot.slane %v1059, %v1087
      %v1090 = vsel %vm958, %v1064, %v1070
      %v1091 = vsel %vm960, %v1090, %v1076
      %v1092 = vsel %vm962, %v1091, %v1082
      %v1093 = vsel %vm964, %v1092, %v1088
      %1094 = vset.pattern.permute.xlu0 2
      %1095 = vperm.xlu0 %1094, %v971
      %v1096 = vpop.permute.xlu0 %1095
      %v1098 = vadd.f32 %v1093, %v1096
      %vm1099 = vcmask 31744
      %v1101 = vsel %vm1099, %v976, 0
      %v1104 = vsel %vm1099, %v1037, 0
      %1106 = vmatprep.subr.mxu0 0.0
      %1107 = vmatpush1.xpose.msra.mxu0 %v1104
      %1108 = vmatprep.subr.mxu0 0.0
      %1109 = vmatpush1.xpose.msra.mxu0 0.0
      %1110 = vmatprep.subr.mxu0 0.0
      %1111 = vmatpush1.xpose.msra.mxu0 0.0
      %1112 = vmatprep.subr.mxu0 0.0
      %1113 = vmatpush1.xpose.msra.mxu0 0.0
      %1114 = vmatprep.subr.mxu0 0.0
      %1115 = vmatpush1.xpose.msra.mxu0 0.0
      %1116 = vmatprep.subr.mxu0 0.0
      %1117 = vmatpush1.xpose.msra.mxu0 0.0
      %1118 = vmatprep.subr.mxu0 0.0
      %1119 = vmatpush1.xpose.msra.mxu0 0.0
      %1120 = vmatprep.subr.mxu0 0.0
      %1121 = vmatpush1.xpose.msra.mxu0 0.0
      %1122 = vmatprep.subr.mxu0 0.0
      %1123 = vmatpush1.xpose.msra.mxu0 0.0
      %1124 = vmatprep.subr.mxu0 0.0
      %1125 = vmatpush1.xpose.msra.mxu0 0.0
      %1126 = vmatprep.subr.mxu0 0.0
      %1127 = vmatpush1.xpose.msra.mxu0 0.0
      %1128 = vmatprep.subr.mxu0 0.0
      %1129 = vmatpush1.xpose.msra.mxu0 0.0
      %1130 = vmatprep.subr.mxu0 0.0
      %1131 = vmatpush1.xpose.msra.mxu0 0.0
      %1132 = vmatprep.subr.mxu0 0.0
      %1133 = vmatpush1.xpose.msra.mxu0 0.0
      %1134 = vmatprep.subr.mxu0 0.0
      %1135 = vmatpush1.xpose.msra.mxu0 0.0
      %1136 = vmatprep.subr.mxu0 0.0
      %1137 = vmatpush1.xpose.msra.mxu0 0.0
      %1138 = vmatprep.subr.mxu0 0.0
      %1139 = vmatpush1.xpose.msra.mxu0 0.0
      %1140 = vmatprep.subr.mxu0 0.0
      %1141 = vmatpush1.xpose.msra.mxu0 0.0
      %1142 = vmatprep.subr.mxu0 0.0
      %1143 = vmatpush1.xpose.msra.mxu0 0.0
      %1144 = vmatprep.subr.mxu0 0.0
      %1145 = vmatpush1.xpose.msra.mxu0 0.0
      %1146 = vmatprep.subr.mxu0 0.0
      %1147 = vmatpush1.xpose.msra.mxu0 0.0
      %1148 = vmatprep.subr.mxu0 0.0
      %1149 = vmatpush1.xpose.msra.mxu0 0.0
      %1150 = vmatprep.subr.mxu0 0.0
      %1151 = vmatpush1.xpose.msra.mxu0 0.0
      %1152 = vmatprep.subr.mxu0 0.0
      %1153 = vmatpush1.xpose.msra.mxu0 0.0
      %1154 = vmatprep.subr.mxu0 0.0
      %1155 = vmatpush1.xpose.msra.mxu0 0.0
      %1156 = vmatprep.subr.mxu0 0.0
      %1157 = vmatpush1.xpose.msra.mxu0 0.0
      %1158 = vmatprep.subr.mxu0 0.0
      %1159 = vmatpush1.xpose.msra.mxu0 0.0
      %1160 = vmatprep.subr.mxu0 0.0
      %1161 = vmatpush1.xpose.msra.mxu0 0.0
      %1162 = vmatprep.subr.mxu0 0.0
      %1163 = vmatpush1.xpose.msra.mxu0 0.0
      %1164 = vmatprep.subr.mxu0 0.0
      %1165 = vmatpush1.xpose.msra.mxu0 0.0
      %1166 = vmatprep.subr.mxu0 0.0
      %1167 = vmatpush1.xpose.msra.mxu0 0.0
      %1168 = vmatprep.subr.mxu0 0.0
      %1169 = vmatpush1.xpose.msra.mxu0 0.0
      %1170 = vmatprep.mubr.f32.mxu0 0.0
      %1171 = vmatmul.mubr.f32.gmra.mrb[0].mxu0 %v1101
      %v1172 = vpop.f32.mrb[0].mxu0
      %v1173 = vadd.f32 0.0, %v1172
      %v1174 = vpop.f32.mrb[0].mxu0
      %1175 = vdwg.mxu0
      %vm1176 = vcmask 36864
      %v1177 = vsel %vm1176, %v1173, -inf
      %1178 = vmax.xlane.f32.xlu0 %v1177
      %v1179 = vpop.xlane.xlu0 %1178
      %v1180 = vsub.f32 %v1173, %v1179
      %v1181 = vmul.f32 %v1180, 1.442695
      %v1182 = vpow.pop %v1181
      %v1183 = vsel %vm1176, %v1182, 0.0
      %1184 = vadd.xlane.f32.xlu0 %v1183
      %v1185 = vpop.xlane.xlu0 %1184
      %v1186 = vrcp.pop %v1185
      %v1187 = vmul.f32 %v1182, %v1186
      %vm1188 = vcmask 39936
      %v1190 = vsel %vm1188, %v1187, 0
      %vm1192 = vcmask 1044480
      %v1194 = vsel %vm1192, %v1098, 0
      %1196 = vmatprep.subr.mxu0 0.0
      %1197 = vmatpush1.msra.mxu0 %v1194
      %1198 = vmatprep.subr.mxu0 0.0
      %1199 = vmatpush1.msra.mxu0 0.0
      %1200 = vmatprep.subr.mxu0 0.0
      %1201 = vmatpush1.msra.mxu0 0.0
      %1202 = vmatprep.subr.mxu0 0.0
      %1203 = vmatpush1.msra.mxu0 0.0
      %1204 = vmatprep.subr.mxu0 0.0
      %1205 = vmatpush1.msra.mxu0 0.0
      %1206 = vmatprep.subr.mxu0 0.0
      %1207 = vmatpush1.msra.mxu0 0.0
      %1208 = vmatprep.subr.mxu0 0.0
      %1209 = vmatpush1.msra.mxu0 0.0
      %1210 = vmatprep.subr.mxu0 0.0
      %1211 = vmatpush1.msra.mxu0 0.0
      %1212 = vmatprep.subr.mxu0 0.0
      %1213 = vmatpush1.msra.mxu0 0.0
      %1214 = vmatprep.subr.mxu0 0.0
      %1215 = vmatpush1.msra.mxu0 0.0
      %1216 = vmatprep.subr.mxu0 0.0
      %1217 = vmatpush1.msra.mxu0 0.0
      %1218 = vmatprep.subr.mxu0 0.0
      %1219 = vmatpush1.msra.mxu0 0.0
      %1220 = vmatprep.subr.mxu0 0.0
      %1221 = vmatpush1.msra.mxu0 0.0
      %1222 = vmatprep.subr.mxu0 0.0
      %1223 = vmatpush1.msra.mxu0 0.0
      %1224 = vmatprep.subr.mxu0 0.0
      %1225 = vmatpush1.msra.mxu0 0.0
      %1226 = vmatprep.subr.mxu0 0.0
      %1227 = vmatpush1.msra.mxu0 0.0
      %1228 = vmatprep.subr.mxu0 0.0
      %1229 = vmatpush1.msra.mxu0 0.0
      %1230 = vmatprep.subr.mxu0 0.0
      %1231 = vmatpush1.msra.mxu0 0.0
      %1232 = vmatprep.subr.mxu0 0.0
      %1233 = vmatpush1.msra.mxu0 0.0
      %1234 = vmatprep.subr.mxu0 0.0
      %1235 = vmatpush1.msra.mxu0 0.0
      %1236 = vmatprep.subr.mxu0 0.0
      %1237 = vmatpush1.msra.mxu0 0.0
      %1238 = vmatprep.subr.mxu0 0.0
      %1239 = vmatpush1.msra.mxu0 0.0
      %1240 = vmatprep.subr.mxu0 0.0
      %1241 = vmatpush1.msra.mxu0 0.0
      %1242 = vmatprep.subr.mxu0 0.0
      %1243 = vmatpush1.msra.mxu0 0.0
      %1244 = vmatprep.subr.mxu0 0.0
      %1245 = vmatpush1.msra.mxu0 0.0
      %1246 = vmatprep.subr.mxu0 0.0
      %1247 = vmatpush1.msra.mxu0 0.0
      %1248 = vmatprep.subr.mxu0 0.0
      %1249 = vmatpush1.msra.mxu0 0.0
      %1250 = vmatprep.subr.mxu0 0.0
      %1251 = vmatpush1.msra.mxu0 0.0
      %1252 = vmatprep.subr.mxu0 0.0
      %1253 = vmatpush1.msra.mxu0 0.0
      %1254 = vmatprep.subr.mxu0 0.0
      %1255 = vmatpush1.msra.mxu0 0.0
      %1256 = vmatprep.subr.mxu0 0.0
      %1257 = vmatpush1.msra.mxu0 0.0
      %1258 = vmatprep.subr.mxu0 0.0
      %1259 = vmatpush1.msra.mxu0 0.0
      %1260 = vmatprep.mubr.f32.mxu0 0.0
      %1261 = vmatmul.mubr.f32.gmra.mrb[0].mxu0 %v1190
      %v1262 = vpop.f32.mrb[0].mxu0
      %v1263 = vadd.f32 0.0, %v1262
      %v1264 = vpop.f32.mrb[0].mxu0
      %1265 = vdwg.mxu0
      %v1266 = vld [vmem:[%s10] sm:$0x1f]
      %v1267 = vld [vmem:[%s11] sm:$0x1f]
      %1269 = vset.pattern.permute.xlu0 0
      %1270 = vperm.xlu0 %1269, %v1267
      %v1271 = vpop.permute.xlu0 %1270
      %v1274 = vsel %vm1188, %v1266, 0
      %v1277 = vsel %vm1192, %v1263, 0
      %1279 = vmatprep.subr.mxu0 0.0
      %1280 = vmatpush1.msra.mxu0 %v1277
      %1281 = vmatprep.subr.mxu0 0.0
      %1282 = vmatpush1.msra.mxu0 0.0
      %1283 = vmatprep.subr.mxu0 0.0
      %1284 = vmatpush1.msra.mxu0 0.0
      %1285 = vmatprep.subr.mxu0 0.0
      %1286 = vmatpush1.msra.mxu0 0.0
      %1287 = vmatprep.subr.mxu0 0.0
      %1288 = vmatpush1.msra.mxu0 0.0
      %1289 = vmatprep.subr.mxu0 0.0
      %1290 = vmatpush1.msra.mxu0 0.0
      %1291 = vmatprep.subr.mxu0 0.0
      %1292 = vmatpush1.msra.mxu0 0.0
      %1293 = vmatprep.subr.mxu0 0.0
      %1294 = vmatpush1.msra.mxu0 0.0
      %1295 = vmatprep.subr.mxu0 0.0
      %1296 = vmatpush1.msra.mxu0 0.0
      %1297 = vmatprep.subr.mxu0 0.0
      %1298 = vmatpush1.msra.mxu0 0.0
      %1299 = vmatprep.subr.mxu0 0.0
      %1300 = vmatpush1.msra.mxu0 0.0
      %1301 = vmatprep.subr.mxu0 0.0
      %1302 = vmatpush1.msra.mxu0 0.0
      %1303 = vmatprep.subr.mxu0 0.0
      %1304 = vmatpush1.msra.mxu0 0.0
      %1305 = vmatprep.subr.mxu0 0.0
      %1306 = vmatpush1.msra.mxu0 0.0
      %1307 = vmatprep.subr.mxu0 0.0
      %1308 = vmatpush1.msra.mxu0 0.0
      %1309 = vmatprep.subr.mxu0 0.0
      %1310 = vmatpush1.msra.mxu0 0.0
      %1311 = vmatprep.subr.mxu0 0.0
      %1312 = vmatpush1.msra.mxu0 0.0
      %1313 = vmatprep.subr.mxu0 0.0
      %1314 = vmatpush1.msra.mxu0 0.0
      %1315 = vmatprep.subr.mxu0 0.0
      %1316 = vmatpush1.msra.mxu0 0.0
      %1317 = vmatprep.subr.mxu0 0.0
      %1318 = vmatpush1.msra.mxu0 0.0
      %1319 = vmatprep.subr.mxu0 0.0
      %1320 = vmatpush1.msra.mxu0 0.0
      %1321 = vmatprep.subr.mxu0 0.0
      %1322 = vmatpush1.msra.mxu0 0.0
      %1323 = vmatprep.subr.mxu0 0.0
      %1324 = vmatpush1.msra.mxu0 0.0
      %1325 = vmatprep.subr.mxu0 0.0
      %1326 = vmatpush1.msra.mxu0 0.0
      %1327 = vmatprep.subr.mxu0 0.0
      %1328 = vmatpush1.msra.mxu0 0.0
      %1329 = vmatprep.subr.mxu0 0.0
      %1330 = vmatpush1.msra.mxu0 0.0
      %1331 = vmatprep.subr.mxu0 0.0
      %1332 = vmatpush1.msra.mxu0 0.0
      %1333 = vmatprep.subr.mxu0 0.0
      %1334 = vmatpush1.msra.mxu0 0.0
      %1335 = vmatprep.subr.mxu0 0.0
      %1336 = vmatpush1.msra.mxu0 0.0
      %1337 = vmatprep.subr.mxu0 0.0
      %1338 = vmatpush1.msra.mxu0 0.0
      %1339 = vmatprep.subr.mxu0 0.0
      %1340 = vmatpush1.msra.mxu0 0.0
      %1341 = vmatprep.subr.mxu0 0.0
      %1342 = vmatpush1.msra.mxu0 0.0
      %1343 = vmatprep.mubr.f32.mxu0 0.0
      %1344 = vmatmul.mubr.f32.gmra.mrb[0].mxu0 %v1274
      %v1345 = vpop.f32.mrb[0].mxu0
      %v1346 = vadd.f32 %v1271, %v1345
      %v1347 = vpop.f32.mrb[0].mxu0
      %1348 = vdwg.mxu0
      %vm1349 = vcmask 28672
      %1350 = vst.msk [vmem:[%s411] sm:$0x1f] %vm1349, %v1346
      %p1351 = scmp.lt.s32.totalorder %s23, 1
      %s1352 = scalar_select %p1351, %s23, 1
      %s1353 = smul.addr %s1352, 8
      %s1354 = scalar_lea.vmem %s12, %s1353
      // Predicated region
      $region69: #{stepwise_patch_merging.1} parent=67 // pred_check
        %p1355 = pneg %p298
      $region70: #{stepwise_patch_merging.1} parent=67 // pred_check_branch
        %1357 = sbr.rel (%p1355) target = $region72
      $region71: #{stepwise_patch_merging.1} parent=67 // pred_region
        _
      $region72: #{stepwise_patch_merging.1} parent=67 // pred_fallthru
        _
    $region68: #{stepwise_patch_merging.1} parent=5 // pred_fallthru
      _
    %p1358 = scmp.le.s32.totalorder 2, %s18
    // Predicated region
    $region73: #{stepwise_patch_merging.1} parent=5 // pred_check
      %p1359 = pneg %p1358
    $region74: #{stepwise_patch_merging.1} parent=5 // pred_check_branch
      %1361 = sbr.rel (%p1359) target = $region76
    $region75: #{stepwise_patch_merging.1} parent=5 // pred_region
      %s1362 = ssub.s32 %s18, 2
      // Predicated region
      $region77: #{stepwise_patch_merging.1} parent=75 // pred_check
        %p1363 = pneg %p304
      $region78: #{stepwise_patch_merging.1} parent=75 // pred_check_branch
        %1365 = sbr.rel (%p1363) target = $region80
      $region79: #{stepwise_patch_merging.1} parent=75 // pred_region
        %p1366 = scmp.lt.s32.totalorder %s24, 1
        %s1367 = scalar_select %p1366, %s24, 1
        %s1368 = smul.addr %s1367, 8
        %s1369 = scalar_lea.vmem %s12, %s1368
      $region80: #{stepwise_patch_merging.1} parent=75 // pred_fallthru
        _
    $region76: #{stepwise_patch_merging.1} parent=5 // pred_fallthru
      _
  $region6: #{stepwise_patch_merging.1} parent=0 // loop_footer
    %s22 = sadd.s32 1, %s18
  $region7: #{stepwise_patch_merging.1} parent=0 // loop_footer_branch
    %17 = sbr.rel target = $region3
  $region8: #{stepwise_patch_merging.1} parent=0 // loop_exit
    _

</llo_original>
